<compile_context>
chip_gen: v6e
topology: v6e:2x2x1
jax: 0.10.0
libtpu: 0.0.40
codegen_flags: <defaults>
</compile_context>

<pallas_src>
import functools

import numpy as np
import jax
import jax.numpy as jnp
from jax.experimental import pallas as pl
from jax.experimental.pallas import tpu as pltpu

# Small but self-consistent configuration.  num_hist must be 10/20/50 for the
# StateHistoryEncoder conv stack -> use 10.  Network widths keep the module defaults.
CFG = dict(
    num_prop=16,
    num_scan=32,
    num_priv_latent=8,
    num_priv_explicit=8,
    num_hist=10,
    num_actions=12,
    tanh=True,
    actor_hidden_dims=(512, 256, 128),
    scan_encoder_dims=(128, 64, 32),   # unused at runtime: scandots_latent is provided
    priv_encoder_dims=(64, 20),        # unused at runtime: hist_encoding=True
    estimator_hidden_dims=(128, 64, 32),
    channel_size=10,                   # StateHistoryEncoder channel_size
)

DEPTH_LATENT_DIM = 32                  # the module literally slices obs[-32:]


def _obs_layout(cfg):
    """Flat-obs layout constants: [prop|scan|priv_explicit|priv_latent|hist|depth]."""
    np_, ns = cfg["num_prop"], cfg["num_scan"]
    npl, npe = cfg["num_priv_latent"], cfg["num_priv_explicit"]
    nh = cfg["num_hist"]
    num_obs = np_ + ns + nh * np_ + npl + npe
    total = num_obs + DEPTH_LATENT_DIM
    hist_start = num_obs - nh * np_
    # The kernel's static lane slices assume obs fits exactly in two 128-lane rows
    # with the history starting inside row 0.
    assert total == 256 and hist_start == 64 and nh == 10, \
        "kernel slicing constants assume the default HardwareVisionNN config"
    return num_obs, hist_start, total


def _elu(x):
    return jnp.where(x > 0, x, jnp.exp(x) - 1.0)


# ----------------------------- kernel -----------------------------

def hardware_vision_kernel(obs_ref, hist_ref, w32_ref, w64_ref, w128_ref,
                           w256_ref, w512_ref, out_ref, *,
                           layout, n_prop, hist_row0, hist_row1, depth_lanes,
                           apply_tanh):
    f32, bf16 = jnp.float32, jnp.bfloat16
    refs = {"w32": w32_ref, "w64": w64_ref, "w128": w128_ref,
            "w256": w256_ref, "w512": w512_ref}

    def W(name):                               # bf16 weight block, fed straight to the MXU
        slab, off, rows, cols = layout[name]
        return refs[slab][off:off + rows, 0:cols]

    def B(name):                               # bias joins the f32 accumulator
        return W(name).astype(f32)

    def dot(a, w):
        # bf16 x bf16 -> f32 accumulation: single-pass MXU matmul, no weight upcast.
        return jnp.dot(a.astype(bf16), w, preferred_element_type=f32)

    # obs (256,) viewed as (2, 128):
    #   row 0 = [prop | scan | priv_explicit | priv_latent | hist elems 0:64]
    #   row 1 = [hist elems 64:160 | depth_latent]
    prop = obs_ref[0:1, 0:n_prop]                                   # (1, 16)
    est_a = obs_ref[0:1, hist_row0[0]:hist_row0[1]]                 # hist elems   0:64
    est_b = obs_ref[1:2, hist_row1[0]:hist_row1[1]]                 # hist elems  64:160
    depth = obs_ref[1:2, depth_lanes[0]:depth_lanes[1]]             # (1, 32) scandots latent
    hist_even = hist_ref[0]                                         # (5, 16) timesteps 0,2,4,6,8
    hist_odd = hist_ref[1]                                          # (5, 16) timesteps 1,3,5,7,9

    # ---- Estimator MLP (the value torch writes into the priv_explicit slot of obs;
    #      that slot is only ever read back as this value, so no in-place write needed).
    #      Its 160-wide input straddles the two obs rows -> first layer is two dots. ----
    x = _elu(dot(est_a, W("e_w1a")) + dot(est_b, W("e_w1b")) + B("e_b1"))
    x = _elu(dot(x, W("e_w2")) + B("e_b2"))
    x = _elu(dot(x, W("e_w3")) + B("e_b3"))
    est = dot(x, W("e_w4")) + B("e_b4")                             # (1, num_priv_explicit)

    # ---- StateHistoryEncoder (hist_encoding=True path) ----
    enc_w, enc_b = W("enc_w"), B("enc_b")
    proj_even = _elu(dot(hist_even, enc_w) + enc_b)                 # proj rows 0,2,4,6,8  (5, 3cs)
    proj_odd = _elu(dot(hist_odd, enc_w) + enc_b)                   # proj rows 1,3,5,7,9  (5, 3cs)

    # Conv1d #1 (kernel 4, stride 2, L1 = 4).  Output row t uses proj rows 2t..2t+3:
    #   tap 0 -> even rows 0..3, tap 2 -> even rows 1..4,
    #   tap 1 -> odd  rows 0..3, tap 3 -> odd  rows 1..4.  All contiguous sublane slices.
    h1 = _elu(dot(proj_even[0:4, :], W("c1_w0"))
              + dot(proj_odd[0:4, :], W("c1_w1"))
              + dot(proj_even[1:5, :], W("c1_w2"))
              + dot(proj_odd[1:5, :], W("c1_w3"))
              + B("c1_b"))                                          # (4, 2cs)

    # Conv1d #2 (kernel 2, stride 1, L2 = 3): contiguous slices per tap.
    h2 = _elu(dot(h1[0:3, :], W("c2_w0"))
              + dot(h1[1:4, :], W("c2_w1"))
              + B("c2_b"))                                          # (3, cs)

    # Output linear.  The torch channel-major nn.Flatten is folded into per-timestep
    # row blocks of lo_w (done at pack time), so no lane concatenation is needed.
    lo = B("lo_b")
    for t in range(3):
        lo = lo + dot(h2[t:t + 1, :], W("lo_w%d" % t))
    hist_lat = _elu(lo)                                             # (1, 20)

    # ---- Actor backbone: [prop | depth_latent | est | hist_latent] -> 512 -> 256 -> 128 -> act.
    # Layer 1 stays row-split per input segment: 4 tiny MXU pushes instead of an unaligned
    # lane concatenation (cheaper than relayout work, and invisible next to the weight DMA).
    y = _elu(dot(prop, W("a_w1_prop"))
             + dot(depth, W("a_w1_depth"))
             + dot(est, W("a_w1_est"))
             + dot(hist_lat, W("a_w1_hist"))
             + B("a_b1"))
    y = _elu(dot(y, W("a_w2")) + B("a_b2"))
    y = _elu(dot(y, W("a_w3")) + B("a_b3"))
    y = dot(y, W("a_w4")) + B("a_b4")
    if apply_tanh:
        y = jnp.tanh(y)
    out_ref[...] = y


# ----------------------------- parameter construction -----------------------------

def init_params(key, cfg):
    """Deterministic synthetic parameters, torch layout (Linear: (out,in); Conv1d: (out,in,k))."""
    def nxt():
        nonlocal key
        key, sub = jax.random.split(key)
        return sub

    def linear(fan_in, fan_out):
        w = jax.random.normal(nxt(), (fan_out, fan_in), jnp.float32) / jnp.sqrt(float(fan_in))
        b = 0.01 * jax.random.normal(nxt(), (fan_out,), jnp.float32)
        return (w, b)

    def conv(out_c, in_c, k):
        w = jax.random.normal(nxt(), (out_c, in_c, k), jnp.float32) / jnp.sqrt(float(in_c * k))
        b = 0.01 * jax.random.normal(nxt(), (out_c,), jnp.float32)
        return (w, b)

    np_, nh = cfg["num_prop"], cfg["num_hist"]
    npe, na = cfg["num_priv_explicit"], cfg["num_actions"]
    cs = cfg["channel_size"]

    p = {}
    edims = (np_ * nh,) + tuple(cfg["estimator_hidden_dims"]) + (npe,)
    p["est"] = [linear(edims[i], edims[i + 1]) for i in range(len(edims) - 1)]
    p["enc"] = linear(np_, 3 * cs)
    p["c1"] = conv(2 * cs, 3 * cs, 4)
    p["c2"] = conv(cs, 2 * cs, 2)
    p["lo"] = linear(3 * cs, cfg["priv_encoder_dims"][-1])
    backbone_in = np_ + cfg["scan_encoder_dims"][-1] + npe + cfg["priv_encoder_dims"][-1]
    adims = (backbone_in,) + tuple(cfg["actor_hidden_dims"]) + (na,)
    p["actor"] = [linear(adims[i], adims[i + 1]) for i in range(len(adims) - 1)]
    return p


class _SlabPacker:
    """Packs 2-D row blocks into one lane-dense bf16 slab with static (row, lane) offsets.

    Default alignment is 2 rows (keeps bf16 packed-row pairs sublane-aligned); large MXU
    RHS blocks are packed with align=16 so they land on (16,128)-tile boundaries."""

    def __init__(self, name, lanes):
        self.name, self.lanes = name, lanes
        self.entries, self.layout, self.off = [], {}, 0

    def add(self, key, arr, align=2):
        arr = np.asarray(arr, np.float32)
        if arr.ndim == 1:
            arr = arr.reshape(1, -1)
        self.off += (-self.off) % align
        rows, cols = arr.shape
        assert cols <= self.lanes, (key, cols, self.lanes)
        self.layout[key] = (self.name, self.off, rows, cols)
        self.entries.append((self.off, arr))
        self.off += rows

    def build(self):
        rows = max(self.off, 8)
        buf = np.zeros((rows, self.lanes), np.float32)
        for off, arr in self.entries:
            buf[off:off + arr.shape[0], :arr.shape[1]] = arr
        return jnp.asarray(buf, dtype=jnp.bfloat16)


def prep_kernel_params(p, cfg):
    """Re-layout torch-style params into 5 lane-width-matched bf16 slabs + static layout table."""
    _, hist_start, _ = _obs_layout(cfg)
    cs, np_ = cfg["channel_size"], cfg["num_prop"]
    nh = cfg["num_hist"]
    L2 = (nh - 4) // 2 + 1 - 2 + 1         # 3
    n_depth = DEPTH_LATENT_DIM
    n_pe = cfg["num_priv_explicit"]
    n_hl = cfg["priv_encoder_dims"][-1]
    split = 128 - hist_start               # 64: hist elems in obs row 0 vs row 1

    w32 = _SlabPacker("w32", 32)
    w64 = _SlabPacker("w64", 64)
    w128 = _SlabPacker("w128", 128)
    w256 = _SlabPacker("w256", 256)
    w512 = _SlabPacker("w512", 512)

    def lin_T(wb):
        w, b = wb
        return np.asarray(w, np.float32).T, np.asarray(b, np.float32).reshape(1, -1)

    # --- w128: estimator layer 1 (split at the obs row boundary) + actor layer 3 ---
    w1t, b1t = lin_T(p["est"][0])                      # (160, 128)
    w128.add("e_w1a", w1t[:split], align=16)
    w128.add("e_w1b", w1t[split:], align=16)
    w3t, b3t = lin_T(p["actor"][2])
    w128.add("a_w3", w3t, align=16)
    w128.add("e_b1", b1t)
    w128.add("a_b3", b3t)

    # --- w64: estimator layer 2 ---
    wt, bt = lin_T(p["est"][1])
    w64.add("e_w2", wt, align=16)
    w64.add("e_b2", bt)

    # --- w32: all narrow blocks (estimator tail, history encoder, actor output layer) ---
    wt, bt = lin_T(p["est"][2])
    w32.add("e_w3", wt, align=16)
    w32.add("e_b3", bt)
    wt, bt = lin_T(p["est"][3])
    w32.add("e_w4", wt)
    w32.add("e_b4", bt)

    wt, bt = lin_T(p["enc"])
    w32.add("enc_w", wt)
    w32.add("enc_b", bt)

    c1w, c1b = p["c1"]
    c1w = np.asarray(c1w, np.float32)                  # (2cs, 3cs, 4)
    for k in range(4):
        w32.add("c1_w%d" % k, c1w[:, :, k].T)
    w32.add("c1_b", np.asarray(c1b, np.float32).reshape(1, -1))

    c2w, c2b = p["c2"]
    c2w = np.asarray(c2w, np.float32)                  # (cs, 2cs, 2)
    for k in range(2):
        w32.add("c2_w%d" % k, c2w[:, :, k].T)
    w32.add("c2_b", np.asarray(c2b, np.float32).reshape(1, -1))

    # Output linear: fold torch channel-major flatten (index c*L2+t) into per-t blocks.
    low, lob = p["lo"]
    low = np.asarray(low, np.float32)                                   # (out, cs*L2)
    lo3 = np.transpose(low.reshape(low.shape[0], cs, L2), (2, 1, 0))    # (L2, cs, out)
    for t in range(L2):
        w32.add("lo_w%d" % t, lo3[t])
    w32.add("lo_b", np.asarray(lob, np.float32).reshape(1, -1))

    wt, bt = lin_T(p["actor"][3])
    w32.add("a_w4", wt, align=16)
    w32.add("a_b4", bt)

    # --- w512: actor layer 1 (76 -> 512), row-split per input segment (no in-kernel concat) ---
    a1w, a1b = p["actor"][0]
    a1wt = np.asarray(a1w, np.float32).T                                # (76, 512)
    o = 0
    for nm, n in (("a_w1_prop", np_), ("a_w1_depth", n_depth),
                  ("a_w1_est", n_pe), ("a_w1_hist", n_hl)):
        w512.add(nm, a1wt[o:o + n], align=16 if n >= 16 else 2)
        o += n
    w512.add("a_b1", np.asarray(a1b, np.float32).reshape(1, -1))

    # --- w256: actor layer 2 ---
    wt, bt = lin_T(p["actor"][1])
    w256.add("a_w2", wt, align=16)
    w256.add("a_b2", bt)

    layout, slabs = {}, {}
    for pk in (w32, w64, w128, w256, w512):
        layout.update(pk.layout)
        slabs[pk.name] = pk.build()
    return slabs, layout


# ----------------------------- wrapper -----------------------------

def hardware_vision_nn(obs, slabs, layout, cfg):
    na, np_, nh = cfg["num_actions"], cfg["num_prop"], cfg["num_hist"]
    num_obs, hist_start, total = _obs_layout(cfg)

    obs2 = obs.reshape(total // 128, 128)                       # (2, 128): no data movement
    # Even/odd history rows, sublane-stacked (one tiny fused gather in the wrapper, so every
    # conv tap in the kernel is a contiguous sublane slice).
    hist_eo = (obs[hist_start:hist_start + nh * np_]
               .reshape(nh // 2, 2, np_).transpose(1, 0, 2))    # (2, 5, 16): [even; odd]

    kernel = functools.partial(
        hardware_vision_kernel,
        layout=layout,
        n_prop=np_,
        hist_row0=(hist_start, 128),        # hist elems 0:64   -> obs row 0, lanes 64:128
        hist_row1=(0, num_obs - 128),       # hist elems 64:160 -> obs row 1, lanes 0:96
        depth_lanes=(num_obs - 128, 128),   # depth latent      -> obs row 1, lanes 96:128
        apply_tanh=cfg["tanh"],
    )
    args = (obs2, hist_eo, slabs["w32"], slabs["w64"], slabs["w128"],
            slabs["w256"], slabs["w512"])
    out = pl.pallas_call(
        kernel,
        out_shape=jax.ShapeDtypeStruct((1, na), jnp.float32),
        in_specs=[pl.BlockSpec(memory_space=pltpu.MemorySpace.VMEM)] * len(args),
        out_specs=pl.BlockSpec(memory_space=pltpu.MemorySpace.VMEM),
    )(*args)
    return out.reshape(na)     # matches torch .squeeze(): (1, num_actions) -> (num_actions,)


# ----------------------------- pure-JAX reference (torch semantics, bf16 matmul inputs) ----------

def ref_forward(obs, p, cfg):
    bf16, f32 = jnp.bfloat16, jnp.float32

    def elu(x):
        return jnp.where(x > 0, x, jnp.exp(x) - 1.0)

    def mm(x, w):   # bf16 x bf16 matmul with f32 accumulation (mirrors the kernel's MXU dots)
        return jnp.dot(x.astype(bf16), w.astype(bf16), preferred_element_type=f32)

    def lin(x, wb):
        w, b = wb
        return mm(x, w.T) + b

    np_, ns = cfg["num_prop"], cfg["num_scan"]
    npl, npe = cfg["num_priv_latent"], cfg["num_priv_explicit"]
    nh, cs = cfg["num_hist"], cfg["channel_size"]
    num_obs = np_ + ns + nh * np_ + npl + npe

    depth_latent = obs[-DEPTH_LATENT_DIM:].reshape(1, DEPTH_LATENT_DIM)
    o = obs[:num_obs].reshape(1, -1)
    hist_flat = o[:, -nh * np_:]

    # Estimator
    x = elu(lin(hist_flat, p["est"][0]))
    x = elu(lin(x, p["est"][1]))
    x = elu(lin(x, p["est"][2]))
    est = lin(x, p["est"][3])

    # StateHistoryEncoder (tsteps=10 branch), torch NCL conv expressed as per-tap matmuls
    hist = hist_flat.reshape(nh, np_)
    proj = elu(lin(hist, p["enc"]))                          # (T, 3cs)
    c1w, c1b = p["c1"]
    c2w, c2b = p["c2"]
    L1 = (nh - 4) // 2 + 1
    h1_rows = []
    for t in range(L1):
        acc = jnp.asarray(c1b, f32).reshape(1, -1)
        for k in range(4):
            acc = acc + mm(proj[2 * t + k:2 * t + k + 1, :], c1w[:, :, k].T)
        h1_rows.append(acc)
    h1 = elu(jnp.concatenate(h1_rows, axis=0))               # (L1, 2cs)
    L2 = L1 - 2 + 1
    h2_rows = []
    for t in range(L2):
        acc = jnp.asarray(c2b, f32).reshape(1, -1)
        for k in range(2):
            acc = acc + mm(h1[t + k:t + k + 1, :], c2w[:, :, k].T)
        h2_rows.append(acc)
    h2 = elu(jnp.concatenate(h2_rows, axis=0))               # (L2, cs)
    flat = h2.T.reshape(1, cs * L2)                          # torch nn.Flatten (channel-major)
    hist_lat = elu(lin(flat, p["lo"]))

    # Actor backbone
    bb = jnp.concatenate([o[:, :np_], depth_latent, est, hist_lat], axis=1)
    y = elu(lin(bb, p["actor"][0]))
    y = elu(lin(y, p["actor"][1]))
    y = elu(lin(y, p["actor"][2]))
    y = lin(y, p["actor"][3])
    if cfg["tanh"]:
        y = jnp.tanh(y)
    return y.squeeze()


if __name__ == "__main__":
    cfg = CFG
    num_obs, _, total = _obs_layout(cfg)
    key = jax.random.PRNGKey(0)
    k_obs, k_par = jax.random.split(key)

    obs = 0.5 * jax.random.normal(k_obs, (total,), jnp.float32)
    params = init_params(k_par, cfg)

    # bf16-round ALL parameters once; the Pallas kernel (bf16 slabs straight to the MXU) and
    # the reference (bf16 matmul inputs) use identical values -> tight numerical comparison
    # while the kernel only moves bf16 weight bytes.
    params_q = jax.tree_util.tree_map(
        lambda a: a.astype(jnp.bfloat16).astype(jnp.float32), params)

    slabs, layout = prep_kernel_params(params_q, cfg)

    fwd = jax.jit(lambda o, s: hardware_vision_nn(o, s, layout, cfg))
    out = jax.block_until_ready(fwd(obs, slabs))

    ref = ref_forward(obs, params_q, cfg)
    assert out.shape == (cfg["num_actions"],)
    if not bool(jnp.allclose(out, ref, atol=2e-3, rtol=2e-3)):
        raise AssertionError(f"kernel/reference mismatch:\n{out}\n{ref}")
    print("KERNEL_OK")
</pallas_src>

<mosaic_0001>
module attributes {stable_mosaic.version = 11 : i64} {
  func.func @hardware_vision_kernel(%arg0: memref<2x128xf32, #tpu.memory_space<vmem>>, %arg1: memref<2x5x16xf32, #tpu.memory_space<vmem>>, %arg2: memref<449x32xbf16, #tpu.memory_space<vmem>>, %arg3: memref<129x64xbf16, #tpu.memory_space<vmem>>, %arg4: memref<419x128xbf16, #tpu.memory_space<vmem>>, %arg5: memref<513x256xbf16, #tpu.memory_space<vmem>>, %arg6: memref<85x512xbf16, #tpu.memory_space<vmem>>, %arg7: memref<1x12xf32, #tpu.memory_space<vmem>>) attributes {dimension_semantics = [], scalar_prefetch = 0 : i64, scratch_operands = 0 : i64, tpu.core_type = #tpu.core_type<tc>} {
    %c0 = arith.constant 0 : index
    %c0_0 = arith.constant 0 : index
    %0 = vector.load %arg0[%c0, %c0_0] : memref<2x128xf32, #tpu.memory_space<vmem>>, vector<1x16xf32>
    %c0_1 = arith.constant 0 : index
    %c64 = arith.constant 64 : index
    %1 = vector.load %arg0[%c0_1, %c64] : memref<2x128xf32, #tpu.memory_space<vmem>>, vector<1x64xf32>
    %c1 = arith.constant 1 : index
    %c0_2 = arith.constant 0 : index
    %2 = vector.load %arg0[%c1, %c0_2] : memref<2x128xf32, #tpu.memory_space<vmem>>, vector<1x96xf32>
    %c1_3 = arith.constant 1 : index
    %c96 = arith.constant 96 : index
    %3 = vector.load %arg0[%c1_3, %c96] : memref<2x128xf32, #tpu.memory_space<vmem>>, vector<1x32xf32>
    %c0_4 = arith.constant 0 : index
    %c0_5 = arith.constant 0 : index
    %c0_6 = arith.constant 0 : index
    %4 = vector.load %arg1[%c0_4, %c0_5, %c0_6] : memref<2x5x16xf32, #tpu.memory_space<vmem>>, vector<1x5x16xf32>
    %5 = vector.shape_cast %4 : vector<1x5x16xf32> to vector<5x16xf32>
    %c1_7 = arith.constant 1 : index
    %c0_8 = arith.constant 0 : index
    %c0_9 = arith.constant 0 : index
    %6 = vector.load %arg1[%c1_7, %c0_8, %c0_9] : memref<2x5x16xf32, #tpu.memory_space<vmem>>, vector<1x5x16xf32>
    %7 = vector.shape_cast %6 : vector<1x5x16xf32> to vector<5x16xf32>
    %c0_10 = arith.constant 0 : index
    %c0_11 = arith.constant 0 : index
    %8 = vector.load %arg4[%c0_10, %c0_11] : memref<419x128xbf16, #tpu.memory_space<vmem>>, vector<64x128xbf16>
    %9 = arith.truncf %1 : vector<1x64xf32> to vector<1x64xbf16>
    %cst = arith.constant dense<0.000000e+00> : vector<1x128xf32>
    %10 = tpu.matmul %9, %8, %cst {dimension_numbers = #tpu.dot_dimension_numbers<[1], [0], [0], [1], [0, 0, 1, 1], [], []>} : vector<1x64xbf16>, vector<64x128xbf16>, vector<1x128xf32> -> vector<1x128xf32>
    %c64_12 = arith.constant 64 : index
    %c0_13 = arith.constant 0 : index
    %11 = vector.load %arg4[%c64_12, %c0_13] : memref<419x128xbf16, #tpu.memory_space<vmem>>, vector<96x128xbf16>
    %12 = arith.truncf %2 : vector<1x96xf32> to vector<1x96xbf16>
    %cst_14 = arith.constant dense<0.000000e+00> : vector<1x128xf32>
    %13 = tpu.matmul %12, %11, %cst_14 {dimension_numbers = #tpu.dot_dimension_numbers<[1], [0], [0], [1], [0, 0, 1, 1], [], []>} : vector<1x96xbf16>, vector<96x128xbf16>, vector<1x128xf32> -> vector<1x128xf32>
    %14 = arith.addf %10, %13 : vector<1x128xf32>
    %c416 = arith.constant 416 : index
    %c0_15 = arith.constant 0 : index
    %15 = vector.load %arg4[%c416, %c0_15] : memref<419x128xbf16, #tpu.memory_space<vmem>>, vector<1x128xbf16>
    %16 = arith.extf %15 : vector<1x128xbf16> to vector<1x128xf32>
    %17 = arith.addf %14, %16 : vector<1x128xf32>
    %cst_16 = arith.constant 0.000000e+00 : f32
    %18 = vector.broadcast %cst_16 : f32 to vector<1x128xf32>
    %19 = arith.cmpf ogt, %17, %18 : vector<1x128xf32>
    %20 = math.exp %17 : vector<1x128xf32>
    %cst_17 = arith.constant 1.000000e+00 : f32
    %21 = vector.broadcast %cst_17 : f32 to vector<1x128xf32>
    %22 = arith.subf %20, %21 : vector<1x128xf32>
    %23 = arith.select %19, %17, %22 : vector<1x128xi1>, vector<1x128xf32>
    %c0_18 = arith.constant 0 : index
    %c0_19 = arith.constant 0 : index
    %24 = vector.load %arg3[%c0_18, %c0_19] : memref<129x64xbf16, #tpu.memory_space<vmem>>, vector<128x64xbf16>
    %25 = arith.truncf %23 : vector<1x128xf32> to vector<1x128xbf16>
    %cst_20 = arith.constant dense<0.000000e+00> : vector<1x64xf32>
    %26 = tpu.matmul %25, %24, %cst_20 {dimension_numbers = #tpu.dot_dimension_numbers<[1], [0], [0], [1], [0, 0, 1, 1], [], []>} : vector<1x128xbf16>, vector<128x64xbf16>, vector<1x64xf32> -> vector<1x64xf32>
    %c128 = arith.constant 128 : index
    %c0_21 = arith.constant 0 : index
    %27 = vector.load %arg3[%c128, %c0_21] : memref<129x64xbf16, #tpu.memory_space<vmem>>, vector<1x64xbf16>
    %28 = arith.extf %27 : vector<1x64xbf16> to vector<1x64xf32>
    %29 = arith.addf %26, %28 : vector<1x64xf32>
    %cst_22 = arith.constant 0.000000e+00 : f32
    %30 = vector.broadcast %cst_22 : f32 to vector<1x64xf32>
    %31 = arith.cmpf ogt, %29, %30 : vector<1x64xf32>
    %32 = math.exp %29 : vector<1x64xf32>
    %cst_23 = arith.constant 1.000000e+00 : f32
    %33 = vector.broadcast %cst_23 : f32 to vector<1x64xf32>
    %34 = arith.subf %32, %33 : vector<1x64xf32>
    %35 = arith.select %31, %29, %34 : vector<1x64xi1>, vector<1x64xf32>
    %c0_24 = arith.constant 0 : index
    %c0_25 = arith.constant 0 : index
    %36 = vector.load %arg2[%c0_24, %c0_25] : memref<449x32xbf16, #tpu.memory_space<vmem>>, vector<64x32xbf16>
    %37 = arith.truncf %35 : vector<1x64xf32> to vector<1x64xbf16>
    %cst_26 = arith.constant dense<0.000000e+00> : vector<1x32xf32>
    %38 = tpu.matmul %37, %36, %cst_26 {dimension_numbers = #tpu.dot_dimension_numbers<[1], [0], [0], [1], [0, 0, 1, 1], [], []>} : vector<1x64xbf16>, vector<64x32xbf16>, vector<1x32xf32> -> vector<1x32xf32>
    %c64_27 = arith.constant 64 : index
    %c0_28 = arith.constant 0 : index
    %39 = vector.load %arg2[%c64_27, %c0_28] : memref<449x32xbf16, #tpu.memory_space<vmem>>, vector<1x32xbf16>
    %40 = arith.extf %39 : vector<1x32xbf16> to vector<1x32xf32>
    %41 = arith.addf %38, %40 : vector<1x32xf32>
    %cst_29 = arith.constant 0.000000e+00 : f32
    %42 = vector.broadcast %cst_29 : f32 to vector<1x32xf32>
    %43 = arith.cmpf ogt, %41, %42 : vector<1x32xf32>
    %44 = math.exp %41 : vector<1x32xf32>
    %cst_30 = arith.constant 1.000000e+00 : f32
    %45 = vector.broadcast %cst_30 : f32 to vector<1x32xf32>
    %46 = arith.subf %44, %45 : vector<1x32xf32>
    %47 = arith.select %43, %41, %46 : vector<1x32xi1>, vector<1x32xf32>
    %c66 = arith.constant 66 : index
    %c0_31 = arith.constant 0 : index
    %48 = vector.load %arg2[%c66, %c0_31] : memref<449x32xbf16, #tpu.memory_space<vmem>>, vector<32x8xbf16>
    %49 = arith.truncf %47 : vector<1x32xf32> to vector<1x32xbf16>
    %cst_32 = arith.constant dense<0.000000e+00> : vector<1x8xf32>
    %50 = tpu.matmul %49, %48, %cst_32 {dimension_numbers = #tpu.dot_dimension_numbers<[1], [0], [0], [1], [0, 0, 1, 1], [], []>} : vector<1x32xbf16>, vector<32x8xbf16>, vector<1x8xf32> -> vector<1x8xf32>
    %c98 = arith.constant 98 : index
    %c0_33 = arith.constant 0 : index
    %51 = vector.load %arg2[%c98, %c0_33] : memref<449x32xbf16, #tpu.memory_space<vmem>>, vector<1x8xbf16>
    %52 = arith.extf %51 : vector<1x8xbf16> to vector<1x8xf32>
    %53 = arith.addf %50, %52 : vector<1x8xf32>
    %c100 = arith.constant 100 : index
    %c0_34 = arith.constant 0 : index
    %54 = vector.load %arg2[%c100, %c0_34] : memref<449x32xbf16, #tpu.memory_space<vmem>>, vector<16x30xbf16>
    %c116 = arith.constant 116 : index
    %c0_35 = arith.constant 0 : index
    %55 = vector.load %arg2[%c116, %c0_35] : memref<449x32xbf16, #tpu.memory_space<vmem>>, vector<1x30xbf16>
    %56 = arith.extf %55 : vector<1x30xbf16> to vector<1x30xf32>
    %57 = arith.truncf %5 : vector<5x16xf32> to vector<5x16xbf16>
    %cst_36 = arith.constant dense<0.000000e+00> : vector<5x30xf32>
    %58 = tpu.matmul %57, %54, %cst_36 {dimension_numbers = #tpu.dot_dimension_numbers<[1], [0], [0], [1], [0, 0, 1, 1], [], []>} : vector<5x16xbf16>, vector<16x30xbf16>, vector<5x30xf32> -> vector<5x30xf32>
    %59 = vector.broadcast %56 : vector<1x30xf32> to vector<5x30xf32>
    %60 = arith.addf %58, %59 : vector<5x30xf32>
    %cst_37 = arith.constant 0.000000e+00 : f32
    %61 = vector.broadcast %cst_37 : f32 to vector<5x30xf32>
    %62 = arith.cmpf ogt, %60, %61 : vector<5x30xf32>
    %63 = math.exp %60 : vector<5x30xf32>
    %cst_38 = arith.constant 1.000000e+00 : f32
    %64 = vector.broadcast %cst_38 : f32 to vector<5x30xf32>
    %65 = arith.subf %63, %64 : vector<5x30xf32>
    %66 = arith.select %62, %60, %65 : vector<5x30xi1>, vector<5x30xf32>
    %67 = arith.truncf %7 : vector<5x16xf32> to vector<5x16xbf16>
    %cst_39 = arith.constant dense<0.000000e+00> : vector<5x30xf32>
    %68 = tpu.matmul %67, %54, %cst_39 {dimension_numbers = #tpu.dot_dimension_numbers<[1], [0], [0], [1], [0, 0, 1, 1], [], []>} : vector<5x16xbf16>, vector<16x30xbf16>, vector<5x30xf32> -> vector<5x30xf32>
    %69 = vector.broadcast %56 : vector<1x30xf32> to vector<5x30xf32>
    %70 = arith.addf %68, %69 : vector<5x30xf32>
    %cst_40 = arith.constant 0.000000e+00 : f32
    %71 = vector.broadcast %cst_40 : f32 to vector<5x30xf32>
    %72 = arith.cmpf ogt, %70, %71 : vector<5x30xf32>
    %73 = math.exp %70 : vector<5x30xf32>
    %cst_41 = arith.constant 1.000000e+00 : f32
    %74 = vector.broadcast %cst_41 : f32 to vector<5x30xf32>
    %75 = arith.subf %73, %74 : vector<5x30xf32>
    %76 = arith.select %72, %70, %75 : vector<5x30xi1>, vector<5x30xf32>
    %77 = vector.extract_strided_slice %66 {offsets = [0, 0], sizes = [4, 30], strides = [1, 1]} : vector<5x30xf32> to vector<4x30xf32>
    %c118 = arith.constant 118 : index
    %c0_42 = arith.constant 0 : index
    %78 = vector.load %arg2[%c118, %c0_42] : memref<449x32xbf16, #tpu.memory_space<vmem>>, vector<30x20xbf16>
    %79 = arith.truncf %77 : vector<4x30xf32> to vector<4x30xbf16>
    %cst_43 = arith.constant dense<0.000000e+00> : vector<4x20xf32>
    %80 = tpu.matmul %79, %78, %cst_43 {dimension_numbers = #tpu.dot_dimension_numbers<[1], [0], [0], [1], [0, 0, 1, 1], [], []>} : vector<4x30xbf16>, vector<30x20xbf16>, vector<4x20xf32> -> vector<4x20xf32>
    %81 = vector.extract_strided_slice %76 {offsets = [0, 0], sizes = [4, 30], strides = [1, 1]} : vector<5x30xf32> to vector<4x30xf32>
    %c148 = arith.constant 148 : index
    %c0_44 = arith.constant 0 : index
    %82 = vector.load %arg2[%c148, %c0_44] : memref<449x32xbf16, #tpu.memory_space<vmem>>, vector<30x20xbf16>
    %83 = arith.truncf %81 : vector<4x30xf32> to vector<4x30xbf16>
    %cst_45 = arith.constant dense<0.000000e+00> : vector<4x20xf32>
    %84 = tpu.matmul %83, %82, %cst_45 {dimension_numbers = #tpu.dot_dimension_numbers<[1], [0], [0], [1], [0, 0, 1, 1], [], []>} : vector<4x30xbf16>, vector<30x20xbf16>, vector<4x20xf32> -> vector<4x20xf32>
    %85 = arith.addf %80, %84 : vector<4x20xf32>
    %86 = vector.extract_strided_slice %66 {offsets = [1, 0], sizes = [4, 30], strides = [1, 1]} : vector<5x30xf32> to vector<4x30xf32>
    %c178 = arith.constant 178 : index
    %c0_46 = arith.constant 0 : index
    %87 = vector.load %arg2[%c178, %c0_46] : memref<449x32xbf16, #tpu.memory_space<vmem>>, vector<30x20xbf16>
    %88 = arith.truncf %86 : vector<4x30xf32> to vector<4x30xbf16>
    %cst_47 = arith.constant dense<0.000000e+00> : vector<4x20xf32>
    %89 = tpu.matmul %88, %87, %cst_47 {dimension_numbers = #tpu.dot_dimension_numbers<[1], [0], [0], [1], [0, 0, 1, 1], [], []>} : vector<4x30xbf16>, vector<30x20xbf16>, vector<4x20xf32> -> vector<4x20xf32>
    %90 = arith.addf %85, %89 : vector<4x20xf32>
    %91 = vector.extract_strided_slice %76 {offsets = [1, 0], sizes = [4, 30], strides = [1, 1]} : vector<5x30xf32> to vector<4x30xf32>
    %c208 = arith.constant 208 : index
    %c0_48 = arith.constant 0 : index
    %92 = vector.load %arg2[%c208, %c0_48] : memref<449x32xbf16, #tpu.memory_space<vmem>>, vector<30x20xbf16>
    %93 = arith.truncf %91 : vector<4x30xf32> to vector<4x30xbf16>
    %cst_49 = arith.constant dense<0.000000e+00> : vector<4x20xf32>
    %94 = tpu.matmul %93, %92, %cst_49 {dimension_numbers = #tpu.dot_dimension_numbers<[1], [0], [0], [1], [0, 0, 1, 1], [], []>} : vector<4x30xbf16>, vector<30x20xbf16>, vector<4x20xf32> -> vector<4x20xf32>
    %95 = arith.addf %90, %94 : vector<4x20xf32>
    %c238 = arith.constant 238 : index
    %c0_50 = arith.constant 0 : index
    %96 = vector.load %arg2[%c238, %c0_50] : memref<449x32xbf16, #tpu.memory_space<vmem>>, vector<1x20xbf16>
    %97 = arith.extf %96 : vector<1x20xbf16> to vector<1x20xf32>
    %98 = vector.broadcast %97 : vector<1x20xf32> to vector<4x20xf32>
    %99 = arith.addf %95, %98 : vector<4x20xf32>
    %cst_51 = arith.constant 0.000000e+00 : f32
    %100 = vector.broadcast %cst_51 : f32 to vector<4x20xf32>
    %101 = arith.cmpf ogt, %99, %100 : vector<4x20xf32>
    %102 = math.exp %99 : vector<4x20xf32>
    %cst_52 = arith.constant 1.000000e+00 : f32
    %103 = vector.broadcast %cst_52 : f32 to vector<4x20xf32>
    %104 = arith.subf %102, %103 : vector<4x20xf32>
    %105 = arith.select %101, %99, %104 : vector<4x20xi1>, vector<4x20xf32>
    %106 = vector.extract_strided_slice %105 {offsets = [0, 0], sizes = [3, 20], strides = [1, 1]} : vector<4x20xf32> to vector<3x20xf32>
    %c240 = arith.constant 240 : index
    %c0_53 = arith.constant 0 : index
    %107 = vector.load %arg2[%c240, %c0_53] : memref<449x32xbf16, #tpu.memory_space<vmem>>, vector<20x10xbf16>
    %108 = arith.truncf %106 : vector<3x20xf32> to vector<3x20xbf16>
    %cst_54 = arith.constant dense<0.000000e+00> : vector<3x10xf32>
    %109 = tpu.matmul %108, %107, %cst_54 {dimension_numbers = #tpu.dot_dimension_numbers<[1], [0], [0], [1], [0, 0, 1, 1], [], []>} : vector<3x20xbf16>, vector<20x10xbf16>, vector<3x10xf32> -> vector<3x10xf32>
    %110 = vector.extract_strided_slice %105 {offsets = [1, 0], sizes = [3, 20], strides = [1, 1]} : vector<4x20xf32> to vector<3x20xf32>
    %c260 = arith.constant 260 : index
    %c0_55 = arith.constant 0 : index
    %111 = vector.load %arg2[%c260, %c0_55] : memref<449x32xbf16, #tpu.memory_space<vmem>>, vector<20x10xbf16>
    %112 = arith.truncf %110 : vector<3x20xf32> to vector<3x20xbf16>
    %cst_56 = arith.constant dense<0.000000e+00> : vector<3x10xf32>
    %113 = tpu.matmul %112, %111, %cst_56 {dimension_numbers = #tpu.dot_dimension_numbers<[1], [0], [0], [1], [0, 0, 1, 1], [], []>} : vector<3x20xbf16>, vector<20x10xbf16>, vector<3x10xf32> -> vector<3x10xf32>
    %114 = arith.addf %109, %113 : vector<3x10xf32>
    %c280 = arith.constant 280 : index
    %c0_57 = arith.constant 0 : index
    %115 = vector.load %arg2[%c280, %c0_57] : memref<449x32xbf16, #tpu.memory_space<vmem>>, vector<1x10xbf16>
    %116 = arith.extf %115 : vector<1x10xbf16> to vector<1x10xf32>
    %117 = vector.broadcast %116 : vector<1x10xf32> to vector<3x10xf32>
    %118 = arith.addf %114, %117 : vector<3x10xf32>
    %cst_58 = arith.constant 0.000000e+00 : f32
    %119 = vector.broadcast %cst_58 : f32 to vector<3x10xf32>
    %120 = arith.cmpf ogt, %118, %119 : vector<3x10xf32>
    %121 = math.exp %118 : vector<3x10xf32>
    %cst_59 = arith.constant 1.000000e+00 : f32
    %122 = vector.broadcast %cst_59 : f32 to vector<3x10xf32>
    %123 = arith.subf %121, %122 : vector<3x10xf32>
    %124 = arith.select %120, %118, %123 : vector<3x10xi1>, vector<3x10xf32>
    %c312 = arith.constant 312 : index
    %c0_60 = arith.constant 0 : index
    %125 = vector.load %arg2[%c312, %c0_60] : memref<449x32xbf16, #tpu.memory_space<vmem>>, vector<1x20xbf16>
    %126 = arith.extf %125 : vector<1x20xbf16> to vector<1x20xf32>
    %127 = vector.extract_strided_slice %124 {offsets = [0, 0], sizes = [1, 10], strides = [1, 1]} : vector<3x10xf32> to vector<1x10xf32>
    %c282 = arith.constant 282 : index
    %c0_61 = arith.constant 0 : index
    %128 = vector.load %arg2[%c282, %c0_61] : memref<449x32xbf16, #tpu.memory_space<vmem>>, vector<10x20xbf16>
    %129 = arith.truncf %127 : vector<1x10xf32> to vector<1x10xbf16>
    %cst_62 = arith.constant dense<0.000000e+00> : vector<1x20xf32>
    %130 = tpu.matmul %129, %128, %cst_62 {dimension_numbers = #tpu.dot_dimension_numbers<[1], [0], [0], [1], [0, 0, 1, 1], [], []>} : vector<1x10xbf16>, vector<10x20xbf16>, vector<1x20xf32> -> vector<1x20xf32>
    %131 = arith.addf %126, %130 : vector<1x20xf32>
    %132 = vector.extract_strided_slice %124 {offsets = [1, 0], sizes = [1, 10], strides = [1, 1]} : vector<3x10xf32> to vector<1x10xf32>
    %c292 = arith.constant 292 : index
    %c0_63 = arith.constant 0 : index
    %133 = vector.load %arg2[%c292, %c0_63] : memref<449x32xbf16, #tpu.memory_space<vmem>>, vector<10x20xbf16>
    %134 = arith.truncf %132 : vector<1x10xf32> to vector<1x10xbf16>
    %cst_64 = arith.constant dense<0.000000e+00> : vector<1x20xf32>
    %135 = tpu.matmul %134, %133, %cst_64 {dimension_numbers = #tpu.dot_dimension_numbers<[1], [0], [0], [1], [0, 0, 1, 1], [], []>} : vector<1x10xbf16>, vector<10x20xbf16>, vector<1x20xf32> -> vector<1x20xf32>
    %136 = arith.addf %131, %135 : vector<1x20xf32>
    %137 = vector.extract_strided_slice %124 {offsets = [2, 0], sizes = [1, 10], strides = [1, 1]} : vector<3x10xf32> to vector<1x10xf32>
    %c302 = arith.constant 302 : index
    %c0_65 = arith.constant 0 : index
    %138 = vector.load %arg2[%c302, %c0_65] : memref<449x32xbf16, #tpu.memory_space<vmem>>, vector<10x20xbf16>
    %139 = arith.truncf %137 : vector<1x10xf32> to vector<1x10xbf16>
    %cst_66 = arith.constant dense<0.000000e+00> : vector<1x20xf32>
    %140 = tpu.matmul %139, %138, %cst_66 {dimension_numbers = #tpu.dot_dimension_numbers<[1], [0], [0], [1], [0, 0, 1, 1], [], []>} : vector<1x10xbf16>, vector<10x20xbf16>, vector<1x20xf32> -> vector<1x20xf32>
    %141 = arith.addf %136, %140 : vector<1x20xf32>
    %cst_67 = arith.constant 0.000000e+00 : f32
    %142 = vector.broadcast %cst_67 : f32 to vector<1x20xf32>
    %143 = arith.cmpf ogt, %141, %142 : vector<1x20xf32>
    %144 = math.exp %141 : vector<1x20xf32>
    %cst_68 = arith.constant 1.000000e+00 : f32
    %145 = vector.broadcast %cst_68 : f32 to vector<1x20xf32>
    %146 = arith.subf %144, %145 : vector<1x20xf32>
    %147 = arith.select %143, %141, %146 : vector<1x20xi1>, vector<1x20xf32>
    %c0_69 = arith.constant 0 : index
    %c0_70 = arith.constant 0 : index
    %148 = vector.load %arg6[%c0_69, %c0_70] : memref<85x512xbf16, #tpu.memory_space<vmem>>, vector<16x512xbf16>
    %149 = arith.truncf %0 : vector<1x16xf32> to vector<1x16xbf16>
    %cst_71 = arith.constant dense<0.000000e+00> : vector<1x512xf32>
    %150 = tpu.matmul %149, %148, %cst_71 {dimension_numbers = #tpu.dot_dimension_numbers<[1], [0], [0], [1], [0, 0, 1, 1], [], []>} : vector<1x16xbf16>, vector<16x512xbf16>, vector<1x512xf32> -> vector<1x512xf32>
    %c16 = arith.constant 16 : index
    %c0_72 = arith.constant 0 : index
    %151 = vector.load %arg6[%c16, %c0_72] : memref<85x512xbf16, #tpu.memory_space<vmem>>, vector<32x512xbf16>
    %152 = arith.truncf %3 : vector<1x32xf32> to vector<1x32xbf16>
    %cst_73 = arith.constant dense<0.000000e+00> : vector<1x512xf32>
    %153 = tpu.matmul %152, %151, %cst_73 {dimension_numbers = #tpu.dot_dimension_numbers<[1], [0], [0], [1], [0, 0, 1, 1], [], []>} : vector<1x32xbf16>, vector<32x512xbf16>, vector<1x512xf32> -> vector<1x512xf32>
    %154 = arith.addf %150, %153 : vector<1x512xf32>
    %c48 = arith.constant 48 : index
    %c0_74 = arith.constant 0 : index
    %155 = vector.load %arg6[%c48, %c0_74] : memref<85x512xbf16, #tpu.memory_space<vmem>>, vector<8x512xbf16>
    %156 = arith.truncf %53 : vector<1x8xf32> to vector<1x8xbf16>
    %cst_75 = arith.constant dense<0.000000e+00> : vector<1x512xf32>
    %157 = tpu.matmul %156, %155, %cst_75 {dimension_numbers = #tpu.dot_dimension_numbers<[1], [0], [0], [1], [0, 0, 1, 1], [], []>} : vector<1x8xbf16>, vector<8x512xbf16>, vector<1x512xf32> -> vector<1x512xf32>
    %158 = arith.addf %154, %157 : vector<1x512xf32>
    %c64_76 = arith.constant 64 : index
    %c0_77 = arith.constant 0 : index
    %159 = vector.load %arg6[%c64_76, %c0_77] : memref<85x512xbf16, #tpu.memory_space<vmem>>, vector<20x512xbf16>
    %160 = arith.truncf %147 : vector<1x20xf32> to vector<1x20xbf16>
    %cst_78 = arith.constant dense<0.000000e+00> : vector<1x512xf32>
    %161 = tpu.matmul %160, %159, %cst_78 {dimension_numbers = #tpu.dot_dimension_numbers<[1], [0], [0], [1], [0, 0, 1, 1], [], []>} : vector<1x20xbf16>, vector<20x512xbf16>, vector<1x512xf32> -> vector<1x512xf32>
    %162 = arith.addf %158, %161 : vector<1x512xf32>
    %c84 = arith.constant 84 : index
    %c0_79 = arith.constant 0 : index
    %163 = vector.load %arg6[%c84, %c0_79] : memref<85x512xbf16, #tpu.memory_space<vmem>>, vector<1x512xbf16>
    %164 = arith.extf %163 : vector<1x512xbf16> to vector<1x512xf32>
    %165 = arith.addf %162, %164 : vector<1x512xf32>
    %cst_80 = arith.constant 0.000000e+00 : f32
    %166 = vector.broadcast %cst_80 : f32 to vector<1x512xf32>
    %167 = arith.cmpf ogt, %165, %166 : vector<1x512xf32>
    %168 = math.exp %165 : vector<1x512xf32>
    %cst_81 = arith.constant 1.000000e+00 : f32
    %169 = vector.broadcast %cst_81 : f32 to vector<1x512xf32>
    %170 = arith.subf %168, %169 : vector<1x512xf32>
    %171 = arith.select %167, %165, %170 : vector<1x512xi1>, vector<1x512xf32>
    %c0_82 = arith.constant 0 : index
    %c0_83 = arith.constant 0 : index
    %172 = vector.load %arg5[%c0_82, %c0_83] : memref<513x256xbf16, #tpu.memory_space<vmem>>, vector<512x256xbf16>
    %173 = arith.truncf %171 : vector<1x512xf32> to vector<1x512xbf16>
    %cst_84 = arith.constant dense<0.000000e+00> : vector<1x256xf32>
    %174 = tpu.matmul %173, %172, %cst_84 {dimension_numbers = #tpu.dot_dimension_numbers<[1], [0], [0], [1], [0, 0, 1, 1], [], []>} : vector<1x512xbf16>, vector<512x256xbf16>, vector<1x256xf32> -> vector<1x256xf32>
    %c512 = arith.constant 512 : index
    %c0_85 = arith.constant 0 : index
    %175 = vector.load %arg5[%c512, %c0_85] : memref<513x256xbf16, #tpu.memory_space<vmem>>, vector<1x256xbf16>
    %176 = arith.extf %175 : vector<1x256xbf16> to vector<1x256xf32>
    %177 = arith.addf %174, %176 : vector<1x256xf32>
    %cst_86 = arith.constant 0.000000e+00 : f32
    %178 = vector.broadcast %cst_86 : f32 to vector<1x256xf32>
    %179 = arith.cmpf ogt, %177, %178 : vector<1x256xf32>
    %180 = math.exp %177 : vector<1x256xf32>
    %cst_87 = arith.constant 1.000000e+00 : f32
    %181 = vector.broadcast %cst_87 : f32 to vector<1x256xf32>
    %182 = arith.subf %180, %181 : vector<1x256xf32>
    %183 = arith.select %179, %177, %182 : vector<1x256xi1>, vector<1x256xf32>
    %c160 = arith.constant 160 : index
    %c0_88 = arith.constant 0 : index
    %184 = vector.load %arg4[%c160, %c0_88] : memref<419x128xbf16, #tpu.memory_space<vmem>>, vector<256x128xbf16>
    %185 = arith.truncf %183 : vector<1x256xf32> to vector<1x256xbf16>
    %cst_89 = arith.constant dense<0.000000e+00> : vector<1x128xf32>
    %186 = tpu.matmul %185, %184, %cst_89 {dimension_numbers = #tpu.dot_dimension_numbers<[1], [0], [0], [1], [0, 0, 1, 1], [], []>} : vector<1x256xbf16>, vector<256x128xbf16>, vector<1x128xf32> -> vector<1x128xf32>
    %c418 = arith.constant 418 : index
    %c0_90 = arith.constant 0 : index
    %187 = vector.load %arg4[%c418, %c0_90] : memref<419x128xbf16, #tpu.memory_space<vmem>>, vector<1x128xbf16>
    %188 = arith.extf %187 : vector<1x128xbf16> to vector<1x128xf32>
    %189 = arith.addf %186, %188 : vector<1x128xf32>
    %cst_91 = arith.constant 0.000000e+00 : f32
    %190 = vector.broadcast %cst_91 : f32 to vector<1x128xf32>
    %191 = arith.cmpf ogt, %189, %190 : vector<1x128xf32>
    %192 = math.exp %189 : vector<1x128xf32>
    %cst_92 = arith.constant 1.000000e+00 : f32
    %193 = vector.broadcast %cst_92 : f32 to vector<1x128xf32>
    %194 = arith.subf %192, %193 : vector<1x128xf32>
    %195 = arith.select %191, %189, %194 : vector<1x128xi1>, vector<1x128xf32>
    %c320 = arith.constant 320 : index
    %c0_93 = arith.constant 0 : index
    %196 = vector.load %arg2[%c320, %c0_93] : memref<449x32xbf16, #tpu.memory_space<vmem>>, vector<128x12xbf16>
    %197 = arith.truncf %195 : vector<1x128xf32> to vector<1x128xbf16>
    %cst_94 = arith.constant dense<0.000000e+00> : vector<1x12xf32>
    %198 = tpu.matmul %197, %196, %cst_94 {dimension_numbers = #tpu.dot_dimension_numbers<[1], [0], [0], [1], [0, 0, 1, 1], [], []>} : vector<1x128xbf16>, vector<128x12xbf16>, vector<1x12xf32> -> vector<1x12xf32>
    %c448 = arith.constant 448 : index
    %c0_95 = arith.constant 0 : index
    %199 = vector.load %arg2[%c448, %c0_95] : memref<449x32xbf16, #tpu.memory_space<vmem>>, vector<1x12xbf16>
    %200 = arith.extf %199 : vector<1x12xbf16> to vector<1x12xf32>
    %201 = arith.addf %198, %200 : vector<1x12xf32>
    %202 = math.tanh %201 : vector<1x12xf32>
    %c0_96 = arith.constant 0 : index
    %c0_97 = arith.constant 0 : index
    %203 = vector.load %arg7[%c0_96, %c0_97] : memref<1x12xf32, #tpu.memory_space<vmem>>, vector<1x12xf32>
    tpu.vector_store %arg7[%c0_96, %c0_97], %202 {strides = array<i32>} : memref<1x12xf32, #tpu.memory_space<vmem>>, vector<1x12xf32>,
    return
  }
}

</mosaic_0001>

<llo_original>
// kernel: _lambda_.1
$region0: #{_lambda_.1}
  #allocation0 [shape = 'u32[]', space=smem, size = 0x4, offset = 0x4, fixed_abs, tag = 'smem constant byte address 0x4 - core index']
  #allocation1 [shape = 'u32[144,128]{1,0:T(1,128)}', space=vmem, size = 0x12000, scoped, tag = 'internal scratch']
  %s0 = inlined_call_operand.vmem [shape: f32[2,128], index: 0, kind: input, shape index: {}]
  %s1 = inlined_call_operand.vmem [shape: f32[2,5,16], index: 1, kind: input, shape index: {}]
  %s2 = inlined_call_operand.vmem [shape: bf16[449,32], index: 2, kind: input, shape index: {}]
  %s3 = inlined_call_operand.vmem [shape: bf16[129,64], index: 3, kind: input, shape index: {}]
  %s4 = inlined_call_operand.vmem [shape: bf16[419,128], index: 4, kind: input, shape index: {}]
  %s5 = inlined_call_operand.hbm [shape: bf16[513,256], index: 5, kind: input, shape index: {}]
  %s6 = inlined_call_operand.vmem [shape: bf16[85,512], index: 6, kind: input, shape index: {}]
  %s7 = inlined_call_operand.hbm [shape: f32[1,12], index: 7, kind: output, shape index: {}]
  %s8 = sld [smem:[#allocation0]]
  $region42: #{_lambda_.1} parent=0
    _
  %s10 = ssub.s32 1, %s8
  %s11 = scalar_select 0, %s10, %s8
  $region1: #{_lambda_.1} parent=0
    #allocation2 [shape = 'u8[266240]{0}', space=vmem, size = 0x41000, scoped, tag = 'input window, operand 5, single buffered']
    #allocation3 [shape = 's32[1]{0}', space=sflag, size = 0x4, scoped, tag = 'scoped memory for _lambda_.1']
    #allocation4 [shape = 's32[1]{0}', space=sflag, size = 0x4, scoped, tag = 'scoped memory for _lambda_.1']
    #allocation5 [shape = 'u8[512]{0}', space=vmem, size = 0x400, scoped, tag = 'output window, operand 0, single buffered']
    %12 = vsyncpa [#allocation3], 0
    %13 = vsyncpa [#allocation4], 0
    // Predicated region
    $region2: #{_lambda_.1} parent=1 // pred_check
      _
    $region3: #{_lambda_.1} parent=1 // pred_check_branch
      %15 = sbr.rel (0) target = $region5
    $region4: #{_lambda_.1} parent=1 // pred_region
      _
    $region5: #{_lambda_.1} parent=1 // pred_fallthru
      _
    // Predicated region
    $region6: #{_lambda_.1} parent=1 // pred_check
      _
    $region7: #{_lambda_.1} parent=1 // pred_check_branch
      %17 = sbr.rel (0) target = $region9
    $region8: #{_lambda_.1} parent=1 // pred_region
      _
    $region9: #{_lambda_.1} parent=1 // pred_fallthru
      _
    // Predicated region
    $region10: #{_lambda_.1} parent=1 // pred_check
      _
    $region11: #{_lambda_.1} parent=1 // pred_check_branch
      %19 = sbr.rel (0) target = $region13
    $region12: #{_lambda_.1} parent=1 // pred_region
      _
    $region13: #{_lambda_.1} parent=1 // pred_fallthru
      _
    // Predicated region
    $region14: #{_lambda_.1} parent=1 // pred_check
      _
    $region15: #{_lambda_.1} parent=1 // pred_check_branch
      %21 = sbr.rel (0) target = $region17
    $region16: #{_lambda_.1} parent=1 // pred_region
      _
    $region17: #{_lambda_.1} parent=1 // pred_fallthru
      _
    // Predicated region
    $region18: #{_lambda_.1} parent=1 // pred_check
      _
    $region19: #{_lambda_.1} parent=1 // pred_check_branch
      %23 = sbr.rel (0) target = $region21
    $region20: #{_lambda_.1} parent=1 // pred_region
      _
    $region21: #{_lambda_.1} parent=1 // pred_fallthru
      _
    // Predicated region
    $region22: #{_lambda_.1} parent=1 // pred_check
      _
    $region23: #{_lambda_.1} parent=1 // pred_check_branch
      %25 = sbr.rel (0) target = $region25
    $region24: #{_lambda_.1} parent=1 // pred_region
      %s27 = ssub.s32 8320, 8320
      %28 = vsyncadd [#allocation3], %s27
      %s29 = sshll.u32 [#allocation2], 4
      %s30 = int_to_ptr.vmem [resolvable:$true] %s29
      %35 = dma.hbm_to_vmem [thread:$0]  %s5, 8320, %s30, [#allocation3], 128, 128, 8
    $region25: #{_lambda_.1} parent=1 // pred_fallthru
      _
    // Predicated region
    $region26: #{_lambda_.1} parent=1 // pred_check
      _
    $region27: #{_lambda_.1} parent=1 // pred_check_branch
      %37 = sbr.rel (0) target = $region29
    $region28: #{_lambda_.1} parent=1 // pred_region
      _
    $region29: #{_lambda_.1} parent=1 // pred_fallthru
      _
    // Predicated region
    $region30: #{_lambda_.1} parent=1 // pred_check
      _
    $region31: #{_lambda_.1} parent=1 // pred_check_branch
      %39 = sbr.rel (0) target = $region33
    $region32: #{_lambda_.1} parent=1 // pred_region
      %40 = dma.done [#allocation3], 8320
    $region33: #{_lambda_.1} parent=1 // pred_fallthru
      _
    %v42 = vld [vmem:[%s0] sm:$0x1]
    %v43 = vld [vmem:[%s0 + $0x1] sm:$0x1]
    %v44 = vld [vmem:[%s1] sm:$0x1f]
    %s45 = scalar_lea.vmem %s1, 8
    %v46 = vld [vmem:[%s45] sm:$0x1f]
    %v47 = vld [vmem:[%s4] sm:$0xf]
    %v48 = vld [vmem:[%s4 + $0x4] sm:$0xf]
    %v49 = vld [vmem:[%s4 + $0x8] sm:$0xf]
    %v50 = vld [vmem:[%s4 + $0xc] sm:$0xf]
    %v51 = vld [vmem:[%s4 + $0x10] sm:$0xf]
    %v52 = vld [vmem:[%s4 + $0x14] sm:$0xf]
    %v53 = vld [vmem:[%s4 + $0x18] sm:$0xf]
    %v54 = vld [vmem:[%s4 + $0x1c] sm:$0xf]
    %v55 = vpack.c.bf16 %v42, %v42
    %v56 = vld [vmem:[%s4 + $0x20] sm:$0xf]
    %v57 = vld [vmem:[%s4 + $0x24] sm:$0xf]
    %v58 = vld [vmem:[%s4 + $0x28] sm:$0xf]
    %v59 = vld [vmem:[%s4 + $0x2c] sm:$0xf]
    %v60 = vld [vmem:[%s4 + $0x30] sm:$0xf]
    %v61 = vld [vmem:[%s4 + $0x34] sm:$0xf]
    %v62 = vld [vmem:[%s4 + $0x38] sm:$0xf]
    %v63 = vld [vmem:[%s4 + $0x3c] sm:$0xf]
    %v64 = vld [vmem:[%s4 + $0x40] sm:$0xf]
    %v65 = vld [vmem:[%s4 + $0x44] sm:$0xf]
    %v66 = vld [vmem:[%s4 + $0x48] sm:$0xf]
    %v67 = vld [vmem:[%s4 + $0x4c] sm:$0xf]
    %v68 = vpack.c.bf16 %v43, %v43
    %v81 = vunpack.c.l.b16 %v56
    %v82 = vunpack.c.l.b16 %v57
    %v83 = vunpack.c.l.b16 %v58
    %v84 = vunpack.c.l.b16 %v59
    %v85 = vunpack.c.l.b16 %v60
    %v86 = vunpack.c.l.b16 %v61
    %v87 = vunpack.c.l.b16 %v62
    %v88 = vunpack.c.l.b16 %v63
    %v89 = vunpack.c.l.b16 %v64
    %v90 = vunpack.c.l.b16 %v65
    %v91 = vunpack.c.l.b16 %v66
    %v92 = vunpack.c.l.b16 %v67
    %v93 = vpack.c.b16 %v82, %v81
    %v94 = vpack.c.b16 %v84, %v83
    %v95 = vpack.c.b16 %v86, %v85
    %v96 = vpack.c.b16 %v88, %v87
    %v97 = vpack.c.b16 %v90, %v89
    %v98 = vpack.c.b16 %v92, %v91
    %vm105 = vcmask 785408
    %v107 = vsel %vm105, %v68, 0
    %109 = vmatprep.subr.bf16.mxu0 0
    %110 = vmatpush1.bf16.msra.mxu0 0
    %111 = vmatprep.subr.bf16.mxu0 0
    %112 = vmatpush1.bf16.msra.mxu0 0
    %113 = vmatprep.subr.bf16.mxu0 0
    %114 = vmatpush1.bf16.msra.mxu0 %v98
    %115 = vmatprep.subr.bf16.mxu0 0
    %116 = vmatpush1.bf16.msra.mxu0 %v97
    %117 = vmatprep.subr.bf16.mxu0 0
    %118 = vmatpush1.bf16.msra.mxu0 %v96
    %119 = vmatprep.subr.bf16.mxu0 0
    %120 = vmatpush1.bf16.msra.mxu0 %v95
    %121 = vmatprep.subr.bf16.mxu0 0
    %122 = vmatpush1.bf16.msra.mxu0 %v94
    %123 = vmatprep.subr.bf16.mxu0 0
    %124 = vmatpush1.bf16.msra.mxu0 %v93
    %125 = vmatprep.subr.bf16.mxu0 0
    %126 = vmatpush2.bf16.msra.mxu0 0
    %127 = vmatprep.subr.bf16.mxu0 0
    %128 = vmatpush2.bf16.msra.mxu0 0
    %129 = vmatprep.subr.bf16.mxu0 0
    %130 = vmatpush2.bf16.msra.mxu0 0
    %131 = vmatprep.subr.bf16.mxu0 0
    %132 = vmatpush2.bf16.msra.mxu0 0
    %133 = vmatprep.subr.bf16.mxu0 0
    %134 = vmatpush2.bf16.msra.mxu0 0
    %135 = vmatprep.subr.bf16.mxu0 0
    %136 = vmatpush2.bf16.msra.mxu0 0
    %137 = vmatprep.subr.bf16.mxu0 0
    %138 = vmatpush2.bf16.msra.mxu0 0
    %139 = vmatprep.subr.bf16.mxu0 0
    %140 = vmatpush2.bf16.msra.mxu0 0
    %141 = vmatprep.mubr.bf16.mxu0 0
    %142 = vmatmul.mubr.bf16.gmra.mxu0 %v107
    %v143 = vpop.f32.mrf.mxu0
    %v144 = vadd.f32 0.0, %v143
    %v145 = vpop.f32.mrf.mxu0
    %v146 = vpop.f32.mrf.mxu0
    %v147 = vpop.f32.mrf.mxu0
    %148 = vdwg.mxu0
    %150 = vrot.lane.b32.xlu0 %v55, 64
    %v151 = vpop.permute.xlu0 %150
    %v160 = vunpack.c.l.b16 %v47
    %v161 = vunpack.c.l.b16 %v48
    %v162 = vunpack.c.l.b16 %v49
    %v163 = vunpack.c.l.b16 %v50
    %v164 = vunpack.c.l.b16 %v51
    %v165 = vunpack.c.l.b16 %v52
    %v166 = vunpack.c.l.b16 %v53
    %v167 = vunpack.c.l.b16 %v54
    %v168 = vpack.c.b16 %v161, %v160
    %v169 = vpack.c.b16 %v163, %v162
    %v170 = vpack.c.b16 %v165, %v164
    %v171 = vpack.c.b16 %v167, %v166
    %vm176 = vcmask 523264
    %v178 = vsel %vm176, %v151, 0
    %180 = vmatprep.subr.bf16.mxu0 0
    %181 = vmatpush1.bf16.msra.mxu0 0
    %182 = vmatprep.subr.bf16.mxu0 0
    %183 = vmatpush1.bf16.msra.mxu0 0
    %184 = vmatprep.subr.bf16.mxu0 0
    %185 = vmatpush1.bf16.msra.mxu0 0
    %186 = vmatprep.subr.bf16.mxu0 0
    %187 = vmatpush1.bf16.msra.mxu0 0
    %188 = vmatprep.subr.bf16.mxu0 0
    %189 = vmatpush1.bf16.msra.mxu0 %v171
    %190 = vmatprep.subr.bf16.mxu0 0
    %191 = vmatpush1.bf16.msra.mxu0 %v170
    %192 = vmatprep.subr.bf16.mxu0 0
    %193 = vmatpush1.bf16.msra.mxu0 %v169
    %194 = vmatprep.subr.bf16.mxu0 0
    %195 = vmatpush1.bf16.msra.mxu0 %v168
    %196 = vmatprep.subr.bf16.mxu0 0
    %197 = vmatpush2.bf16.msra.mxu0 0
    %198 = vmatprep.subr.bf16.mxu0 0
    %199 = vmatpush2.bf16.msra.mxu0 0
    %200 = vmatprep.subr.bf16.mxu0 0
    %201 = vmatpush2.bf16.msra.mxu0 0
    %202 = vmatprep.subr.bf16.mxu0 0
    %203 = vmatpush2.bf16.msra.mxu0 0
    %204 = vmatprep.subr.bf16.mxu0 0
    %205 = vmatpush2.bf16.msra.mxu0 0
    %206 = vmatprep.subr.bf16.mxu0 0
    %207 = vmatpush2.bf16.msra.mxu0 0
    %208 = vmatprep.subr.bf16.mxu0 0
    %209 = vmatpush2.bf16.msra.mxu0 0
    %210 = vmatprep.subr.bf16.mxu0 0
    %211 = vmatpush2.bf16.msra.mxu0 0
    %212 = vmatprep.mubr.bf16.mxu0 0
    %213 = vmatmul.mubr.bf16.gmra.mxu0 %v178
    %v214 = vpop.f32.mrf.mxu0
    %v215 = vadd.f32 %v144, %v214
    %v216 = vpop.f32.mrf.mxu0
    %v217 = vpop.f32.mrf.mxu0
    %v218 = vpop.f32.mrf.mxu0
    %219 = vdwg.mxu0
    %v220 = vld [vmem:[%s4 + $0xd0] sm:$0x1]
    %v221 = vunpack.c.l.bf16 %v220
    %v222 = vadd.f32 %v215, %v221
    %vm223 = vcmp.gt.f32.partialorder %v222, 0.0
    %v224 = vmul.f32 %v222, 1.442695
    %v225 = vpow.pop %v224
    %v226 = vsub.f32 %v225, 1.0
    %v227 = vsel %vm223, %v222, %v226
    %v228 = vld [vmem:[%s3] sm:$0xf]
    %v229 = vld [vmem:[%s3 + $0x4] sm:$0xf]
    %v230 = vld [vmem:[%s3 + $0x8] sm:$0xf]
    %v231 = vld [vmem:[%s3 + $0xc] sm:$0xf]
    %v232 = vld [vmem:[%s3 + $0x10] sm:$0xf]
    %v233 = vld [vmem:[%s3 + $0x14] sm:$0xf]
    %v234 = vld [vmem:[%s3 + $0x18] sm:$0xf]
    %v235 = vld [vmem:[%s3 + $0x1c] sm:$0xf]
    %v236 = vld [vmem:[%s3 + $0x20] sm:$0xf]
    %v237 = vld [vmem:[%s3 + $0x24] sm:$0xf]
    %v238 = vld [vmem:[%s3 + $0x28] sm:$0xf]
    %v239 = vld [vmem:[%s3 + $0x2c] sm:$0xf]
    %v240 = vld [vmem:[%s3 + $0x30] sm:$0xf]
    %v241 = vld [vmem:[%s3 + $0x34] sm:$0xf]
    %v242 = vld [vmem:[%s3 + $0x38] sm:$0xf]
    %v243 = vld [vmem:[%s3 + $0x3c] sm:$0xf]
    %v244 = vpack.c.bf16 %v227, %v227
    %v245 = vld [vmem:[%s3 + $0x40] sm:$0x1]
    %v246 = vunpack.c.l.bf16 %v245
    %v263 = vunpack.c.l.b16 %v228
    %v264 = vunpack.c.l.b16 %v229
    %v265 = vunpack.c.l.b16 %v230
    %v266 = vunpack.c.l.b16 %v231
    %v267 = vunpack.c.l.b16 %v232
    %v268 = vunpack.c.l.b16 %v233
    %v269 = vunpack.c.l.b16 %v234
    %v270 = vunpack.c.l.b16 %v235
    %v271 = vunpack.c.l.b16 %v236
    %v272 = vunpack.c.l.b16 %v237
    %v273 = vunpack.c.l.b16 %v238
    %v274 = vunpack.c.l.b16 %v239
    %v275 = vunpack.c.l.b16 %v240
    %v276 = vunpack.c.l.b16 %v241
    %v277 = vunpack.c.l.b16 %v242
    %v278 = vunpack.c.l.b16 %v243
    %v279 = vpack.c.b16 %v264, %v263
    %v280 = vpack.c.b16 %v266, %v265
    %v281 = vpack.c.b16 %v268, %v267
    %v282 = vpack.c.b16 %v270, %v269
    %v283 = vpack.c.b16 %v272, %v271
    %v284 = vpack.c.b16 %v274, %v273
    %v285 = vpack.c.b16 %v276, %v275
    %v286 = vpack.c.b16 %v278, %v277
    %295 = vmatprep.subr.bf16.mxu0 0
    %296 = vmatpush1.bf16.msra.mxu0 %v286
    %297 = vmatprep.subr.bf16.mxu0 0
    %298 = vmatpush1.bf16.msra.mxu0 %v285
    %299 = vmatprep.subr.bf16.mxu0 0
    %300 = vmatpush1.bf16.msra.mxu0 %v284
    %301 = vmatprep.subr.bf16.mxu0 0
    %302 = vmatpush1.bf16.msra.mxu0 %v283
    %303 = vmatprep.subr.bf16.mxu0 0
    %304 = vmatpush1.bf16.msra.mxu0 %v282
    %305 = vmatprep.subr.bf16.mxu0 0
    %306 = vmatpush1.bf16.msra.mxu0 %v281
    %307 = vmatprep.subr.bf16.mxu0 0
    %308 = vmatpush1.bf16.msra.mxu0 %v280
    %309 = vmatprep.subr.bf16.mxu0 0
    %310 = vmatpush1.bf16.msra.mxu0 %v279
    %311 = vmatprep.subr.bf16.mxu0 0
    %312 = vmatpush2.bf16.msra.mxu0 0
    %313 = vmatprep.subr.bf16.mxu0 0
    %314 = vmatpush2.bf16.msra.mxu0 0
    %315 = vmatprep.subr.bf16.mxu0 0
    %316 = vmatpush2.bf16.msra.mxu0 0
    %317 = vmatprep.subr.bf16.mxu0 0
    %318 = vmatpush2.bf16.msra.mxu0 0
    %319 = vmatprep.subr.bf16.mxu0 0
    %320 = vmatpush2.bf16.msra.mxu0 0
    %321 = vmatprep.subr.bf16.mxu0 0
    %322 = vmatpush2.bf16.msra.mxu0 0
    %323 = vmatprep.subr.bf16.mxu0 0
    %324 = vmatpush2.bf16.msra.mxu0 0
    %325 = vmatprep.subr.bf16.mxu0 0
    %326 = vmatpush2.bf16.msra.mxu0 0
    %327 = vmatprep.mubr.bf16.mxu0 0
    %328 = vmatmul.mubr.bf16.gmra.mxu0 %v244
    %v329 = vpop.f32.mrf.mxu0
    %v330 = vadd.f32 %v246, %v329
    %v331 = vpop.f32.mrf.mxu0
    %v332 = vpop.f32.mrf.mxu0
    %v333 = vpop.f32.mrf.mxu0
    %334 = vdwg.mxu0
    %vm335 = vcmp.gt.f32.partialorder %v330, 0.0
    %v336 = vmul.f32 %v330, 1.442695
    %v337 = vpow.pop %v336
    %v338 = vsub.f32 %v337, 1.0
    %v339 = vsel %vm335, %v330, %v338
    %v340 = vld [vmem:[%s2] sm:$0xf]
    %v341 = vld [vmem:[%s2 + $0x4] sm:$0xf]
    %v342 = vld [vmem:[%s2 + $0x8] sm:$0xf]
    %v343 = vld [vmem:[%s2 + $0xc] sm:$0xf]
    %v344 = vld [vmem:[%s2 + $0x10] sm:$0xf]
    %v345 = vld [vmem:[%s2 + $0x14] sm:$0xf]
    %v346 = vld [vmem:[%s2 + $0x18] sm:$0xf]
    %v347 = vld [vmem:[%s2 + $0x1c] sm:$0xf]
    %v348 = vpack.c.bf16 %v339, %v339
    %v349 = vld [vmem:[%s2 + $0x20] sm:$0x1]
    %v350 = vunpack.c.l.bf16 %v349
    %v359 = vunpack.c.l.b16 %v340
    %v360 = vunpack.c.l.b16 %v341
    %v361 = vunpack.c.l.b16 %v342
    %v362 = vunpack.c.l.b16 %v343
    %v363 = vunpack.c.l.b16 %v344
    %v364 = vunpack.c.l.b16 %v345
    %v365 = vunpack.c.l.b16 %v346
    %v366 = vunpack.c.l.b16 %v347
    %v367 = vpack.c.b16 %v360, %v359
    %v368 = vpack.c.b16 %v362, %v361
    %v369 = vpack.c.b16 %v364, %v363
    %v370 = vpack.c.b16 %v366, %v365
    %v376 = vsel %vm176, %v348, 0
    %378 = vmatprep.subr.bf16.mxu0 0
    %379 = vmatpush1.bf16.msra.mxu0 0
    %380 = vmatprep.subr.bf16.mxu0 0
    %381 = vmatpush1.bf16.msra.mxu0 0
    %382 = vmatprep.subr.bf16.mxu0 0
    %383 = vmatpush1.bf16.msra.mxu0 0
    %384 = vmatprep.subr.bf16.mxu0 0
    %385 = vmatpush1.bf16.msra.mxu0 0
    %386 = vmatprep.subr.bf16.mxu0 0
    %387 = vmatpush1.bf16.msra.mxu0 %v370
    %388 = vmatprep.subr.bf16.mxu0 0
    %389 = vmatpush1.bf16.msra.mxu0 %v369
    %390 = vmatprep.subr.bf16.mxu0 0
    %391 = vmatpush1.bf16.msra.mxu0 %v368
    %392 = vmatprep.subr.bf16.mxu0 0
    %393 = vmatpush1.bf16.msra.mxu0 %v367
    %394 = vmatprep.subr.bf16.mxu0 0
    %395 = vmatpush2.bf16.msra.mxu0 0
    %396 = vmatprep.subr.bf16.mxu0 0
    %397 = vmatpush2.bf16.msra.mxu0 0
    %398 = vmatprep.subr.bf16.mxu0 0
    %399 = vmatpush2.bf16.msra.mxu0 0
    %400 = vmatprep.subr.bf16.mxu0 0
    %401 = vmatpush2.bf16.msra.mxu0 0
    %402 = vmatprep.subr.bf16.mxu0 0
    %403 = vmatpush2.bf16.msra.mxu0 0
    %404 = vmatprep.subr.bf16.mxu0 0
    %405 = vmatpush2.bf16.msra.mxu0 0
    %406 = vmatprep.subr.bf16.mxu0 0
    %407 = vmatpush2.bf16.msra.mxu0 0
    %408 = vmatprep.subr.bf16.mxu0 0
    %409 = vmatpush2.bf16.msra.mxu0 0
    %410 = vmatprep.mubr.bf16.mxu0 0
    %411 = vmatmul.mubr.bf16.gmra.mxu0 %v376
    %v412 = vpop.f32.mrf.mxu0
    %v413 = vadd.f32 %v350, %v412
    %v414 = vpop.f32.mrf.mxu0
    %v415 = vpop.f32.mrf.mxu0
    %v416 = vpop.f32.mrf.mxu0
    %417 = vdwg.mxu0
    %vm418 = vcmp.gt.f32.partialorder %v413, 0.0
    %v419 = vmul.f32 %v413, 1.442695
    %v420 = vpow.pop %v419
    %v421 = vsub.f32 %v420, 1.0
    %v422 = vsel %vm418, %v413, %v421
    %v423 = vld [vmem:[%s2 + $0x20] sm:$0xe]
    %v424 = vld [vmem:[%s2 + $0x24] sm:$0xf]
    %v425 = vld [vmem:[%s2 + $0x28] sm:$0xf]
    %v426 = vld [vmem:[%s2 + $0x2c] sm:$0xf]
    %v427 = vld [vmem:[%s2 + $0x30] sm:$0x1]
    %v428 = vpack.c.bf16 %v422, %v422
    %v429 = vld [vmem:[%s2 + $0x30] sm:$0x2]
    %v430 = vunpack.c.l.bf16 %v429
    %v436 = vunpack.c.l.b16 %v423
    %v437 = vunpack.c.l.b16 %v424
    %v438 = vunpack.c.l.b16 %v425
    %v439 = vunpack.c.l.b16 %v426
    %v440 = vunpack.c.l.b16 %v427
    %v441 = vpack.c.b16 %v437, %v436
    %v442 = vpack.c.b16 %v439, %v438
    %v443 = vpack.c.b16 %v440, %v440
    %vm444 = vcmask 1046528
    %v445 = vrot.slane %v441, 1
    %v446 = vrot.slane %v442, 1
    %v447 = vsel %vm444, %v445, %v446
    %v448 = vrot.slane %v443, 1
    %v449 = vsel %vm444, %v446, %v448
    %v453 = vrot.slane %v430, 2
    %vm455 = vcmask 261120
    %v457 = vsel %vm455, %v428, 0
    %459 = vmatprep.subr.bf16.mxu0 0
    %460 = vmatpush1.bf16.msra.mxu0 0
    %461 = vmatprep.subr.bf16.mxu0 0
    %462 = vmatpush1.bf16.msra.mxu0 0
    %463 = vmatprep.subr.bf16.mxu0 0
    %464 = vmatpush1.bf16.msra.mxu0 0
    %465 = vmatprep.subr.bf16.mxu0 0
    %466 = vmatpush1.bf16.msra.mxu0 0
    %467 = vmatprep.subr.bf16.mxu0 0
    %468 = vmatpush1.bf16.msra.mxu0 0
    %469 = vmatprep.subr.bf16.mxu0 0
    %470 = vmatpush1.bf16.msra.mxu0 0
    %471 = vmatprep.subr.bf16.mxu0 0
    %472 = vmatpush1.bf16.msra.mxu0 %v449
    %473 = vmatprep.subr.bf16.mxu0 0
    %474 = vmatpush1.bf16.msra.mxu0 %v447
    %475 = vmatprep.subr.bf16.mxu0 0
    %476 = vmatpush2.bf16.msra.mxu0 0
    %477 = vmatprep.subr.bf16.mxu0 0
    %478 = vmatpush2.bf16.msra.mxu0 0
    %479 = vmatprep.subr.bf16.mxu0 0
    %480 = vmatpush2.bf16.msra.mxu0 0
    %481 = vmatprep.subr.bf16.mxu0 0
    %482 = vmatpush2.bf16.msra.mxu0 0
    %483 = vmatprep.subr.bf16.mxu0 0
    %484 = vmatpush2.bf16.msra.mxu0 0
    %485 = vmatprep.subr.bf16.mxu0 0
    %486 = vmatpush2.bf16.msra.mxu0 0
    %487 = vmatprep.subr.bf16.mxu0 0
    %488 = vmatpush2.bf16.msra.mxu0 0
    %489 = vmatprep.subr.bf16.mxu0 0
    %490 = vmatpush2.bf16.msra.mxu0 0
    %491 = vmatprep.mubr.bf16.mxu0 0
    %492 = vmatmul.mubr.bf16.gmra.mxu0 %v457
    %v493 = vpop.f32.mrf.mxu0
    %v494 = vadd.f32 %v453, %v493
    %v495 = vpop.f32.mrf.mxu0
    %v496 = vpop.f32.mrf.mxu0
    %v497 = vpop.f32.mrf.mxu0
    %498 = vdwg.mxu0
    %v499 = vld [vmem:[%s2 + $0x30] sm:$0xc]
    %v500 = vld [vmem:[%s2 + $0x34] sm:$0xf]
    %v501 = vld [vmem:[%s2 + $0x38] sm:$0x3]
    %v502 = vld [vmem:[%s2 + $0x38] sm:$0x4]
    %v503 = vunpack.c.l.bf16 %v502
    %v504 = vpack.c.bf16 %v44, %v44
    %v505 = vlaneseq
    %v506 = vshrl.u32 %v505, 7
    %v507 = vsub.s32 4, %v506
    %v508 = vrot.slane %v503, %v507
    %v512 = vunpack.c.l.b16 %v499
    %v513 = vunpack.c.l.b16 %v500
    %v514 = vunpack.c.l.b16 %v501
    %v515 = vpack.c.b16 %v513, %v512
    %v516 = vpack.c.b16 %v514, %v514
    %vm517 = vcmask 1045504
    %v518 = vrot.slane %v515, 2
    %v519 = vrot.slane %v516, 2
    %v520 = vsel %vm517, %v518, %v519
    %vm522 = vcmask 130048
    %v524 = vsel %vm522, %v504, 0
    %526 = vmatprep.subr.bf16.mxu0 0
    %527 = vmatpush1.bf16.msra.mxu0 0
    %528 = vmatprep.subr.bf16.mxu0 0
    %529 = vmatpush1.bf16.msra.mxu0 0
    %530 = vmatprep.subr.bf16.mxu0 0
    %531 = vmatpush1.bf16.msra.mxu0 0
    %532 = vmatprep.subr.bf16.mxu0 0
    %533 = vmatpush1.bf16.msra.mxu0 0
    %534 = vmatprep.subr.bf16.mxu0 0
    %535 = vmatpush1.bf16.msra.mxu0 0
    %536 = vmatprep.subr.bf16.mxu0 0
    %537 = vmatpush1.bf16.msra.mxu0 0
    %538 = vmatprep.subr.bf16.mxu0 0
    %539 = vmatpush1.bf16.msra.mxu0 0
    %540 = vmatprep.subr.bf16.mxu0 0
    %541 = vmatpush1.bf16.msra.mxu0 %v520
    %542 = vmatprep.subr.bf16.mxu0 0
    %543 = vmatpush2.bf16.msra.mxu0 0
    %544 = vmatprep.subr.bf16.mxu0 0
    %545 = vmatpush2.bf16.msra.mxu0 0
    %546 = vmatprep.subr.bf16.mxu0 0
    %547 = vmatpush2.bf16.msra.mxu0 0
    %548 = vmatprep.subr.bf16.mxu0 0
    %549 = vmatpush2.bf16.msra.mxu0 0
    %550 = vmatprep.subr.bf16.mxu0 0
    %551 = vmatpush2.bf16.msra.mxu0 0
    %552 = vmatprep.subr.bf16.mxu0 0
    %553 = vmatpush2.bf16.msra.mxu0 0
    %554 = vmatprep.subr.bf16.mxu0 0
    %555 = vmatpush2.bf16.msra.mxu0 0
    %556 = vmatprep.subr.bf16.mxu0 0
    %557 = vmatpush2.bf16.msra.mxu0 0
    %558 = vmatprep.mubr.bf16.mxu0 0
    %559 = vmatmul.mubr.bf16.gmra.mxu0 %v524
    %v560 = vpop.f32.mrf.mxu0
    %v561 = vadd.f32 %v508, %v560
    %v562 = vpop.f32.mrf.mxu0
    %v563 = vpop.f32.mrf.mxu0
    %v564 = vpop.f32.mrf.mxu0
    %565 = vdwg.mxu0
    %vm566 = vcmp.gt.f32.partialorder %v561, 0.0
    %v567 = vmul.f32 %v561, 1.442695
    %v568 = vpow.pop %v567
    %v569 = vsub.f32 %v568, 1.0
    %v570 = vsel %vm566, %v561, %v569
    %v571 = vpack.c.bf16 %v46, %v46
    %v573 = vsel %vm522, %v571, 0
    %575 = vmatprep.subr.bf16.mxu0 0
    %576 = vmatpush1.bf16.msra.mxu0 0
    %577 = vmatprep.subr.bf16.mxu0 0
    %578 = vmatpush1.bf16.msra.mxu0 0
    %579 = vmatprep.subr.bf16.mxu0 0
    %580 = vmatpush1.bf16.msra.mxu0 0
    %581 = vmatprep.subr.bf16.mxu0 0
    %582 = vmatpush1.bf16.msra.mxu0 0
    %583 = vmatprep.subr.bf16.mxu0 0
    %584 = vmatpush1.bf16.msra.mxu0 0
    %585 = vmatprep.subr.bf16.mxu0 0
    %586 = vmatpush1.bf16.msra.mxu0 0
    %587 = vmatprep.subr.bf16.mxu0 0
    %588 = vmatpush1.bf16.msra.mxu0 0
    %589 = vmatprep.subr.bf16.mxu0 0
    %590 = vmatpush1.bf16.msra.mxu0 %v520
    %591 = vmatprep.subr.bf16.mxu0 0
    %592 = vmatpush2.bf16.msra.mxu0 0
    %593 = vmatprep.subr.bf16.mxu0 0
    %594 = vmatpush2.bf16.msra.mxu0 0
    %595 = vmatprep.subr.bf16.mxu0 0
    %596 = vmatpush2.bf16.msra.mxu0 0
    %597 = vmatprep.subr.bf16.mxu0 0
    %598 = vmatpush2.bf16.msra.mxu0 0
    %599 = vmatprep.subr.bf16.mxu0 0
    %600 = vmatpush2.bf16.msra.mxu0 0
    %601 = vmatprep.subr.bf16.mxu0 0
    %602 = vmatpush2.bf16.msra.mxu0 0
    %603 = vmatprep.subr.bf16.mxu0 0
    %604 = vmatpush2.bf16.msra.mxu0 0
    %605 = vmatprep.subr.bf16.mxu0 0
    %606 = vmatpush2.bf16.msra.mxu0 0
    %607 = vmatprep.mubr.bf16.mxu0 0
    %608 = vmatmul.mubr.bf16.gmra.mxu0 %v573
    %v609 = vpop.f32.mrf.mxu0
    %v610 = vadd.f32 %v508, %v609
    %v611 = vpop.f32.mrf.mxu0
    %v612 = vpop.f32.mrf.mxu0
    %v613 = vpop.f32.mrf.mxu0
    %614 = vdwg.mxu0
    %vm615 = vcmp.gt.f32.partialorder %v610, 0.0
    %v616 = vmul.f32 %v610, 1.442695
    %v617 = vpow.pop %v616
    %v618 = vsub.f32 %v617, 1.0
    %v619 = vsel %vm615, %v610, %v618
    %v620 = vld [vmem:[%s2 + $0x38] sm:$0x8]
    %v621 = vld [vmem:[%s2 + $0x3c] sm:$0xf]
    %v622 = vld [vmem:[%s2 + $0x40] sm:$0xf]
    %v623 = vld [vmem:[%s2 + $0x44] sm:$0xf]
    %v624 = vld [vmem:[%s2 + $0x48] sm:$0x3]
    %v625 = vpack.c.bf16 %v570, %v570
    %v626 = vld [vmem:[%s2 + $0x48] sm:$0xc]
    %v627 = vld [vmem:[%s2 + $0x4c] sm:$0xf]
    %v628 = vld [vmem:[%s2 + $0x50] sm:$0xf]
    %v629 = vld [vmem:[%s2 + $0x54] sm:$0xf]
    %v630 = vld [vmem:[%s2 + $0x58] sm:$0x1]
    %v631 = vpack.c.bf16 %v619, %v619
    %v637 = vunpack.c.l.b16 %v626
    %v638 = vunpack.c.l.b16 %v627
    %v639 = vunpack.c.l.b16 %v628
    %v640 = vunpack.c.l.b16 %v629
    %v641 = vunpack.c.l.b16 %v630
    %v642 = vpack.c.b16 %v638, %v637
    %v643 = vpack.c.b16 %v640, %v639
    %v644 = vpack.c.b16 %v641, %v641
    %v645 = vrot.slane %v642, 2
    %v646 = vrot.slane %v643, 2
    %v647 = vsel %vm517, %v645, %v646
    %v648 = vrot.slane %v644, 2
    %v649 = vsel %vm517, %v646, %v648
    %vm651 = vcmask 244736
    %v653 = vsel %vm651, %v631, 0
    %vm655 = vcmask 1046528
    %v657 = vsel %vm655, %v649, 0
    %659 = vmatprep.subr.bf16.mxu0 0
    %660 = vmatpush1.bf16.msra.mxu0 0
    %661 = vmatprep.subr.bf16.mxu0 0
    %662 = vmatpush1.bf16.msra.mxu0 0
    %663 = vmatprep.subr.bf16.mxu0 0
    %664 = vmatpush1.bf16.msra.mxu0 0
    %665 = vmatprep.subr.bf16.mxu0 0
    %666 = vmatpush1.bf16.msra.mxu0 0
    %667 = vmatprep.subr.bf16.mxu0 0
    %668 = vmatpush1.bf16.msra.mxu0 0
    %669 = vmatprep.subr.bf16.mxu0 0
    %670 = vmatpush1.bf16.msra.mxu0 0
    %671 = vmatprep.subr.bf16.mxu0 0
    %672 = vmatpush1.bf16.msra.mxu0 %v657
    %673 = vmatprep.subr.bf16.mxu0 0
    %674 = vmatpush1.bf16.msra.mxu0 %v647
    %675 = vmatprep.subr.bf16.mxu0 0
    %676 = vmatpush2.bf16.msra.mxu0 0
    %677 = vmatprep.subr.bf16.mxu0 0
    %678 = vmatpush2.bf16.msra.mxu0 0
    %679 = vmatprep.subr.bf16.mxu0 0
    %680 = vmatpush2.bf16.msra.mxu0 0
    %681 = vmatprep.subr.bf16.mxu0 0
    %682 = vmatpush2.bf16.msra.mxu0 0
    %683 = vmatprep.subr.bf16.mxu0 0
    %684 = vmatpush2.bf16.msra.mxu0 0
    %685 = vmatprep.subr.bf16.mxu0 0
    %686 = vmatpush2.bf16.msra.mxu0 0
    %687 = vmatprep.subr.bf16.mxu0 0
    %688 = vmatpush2.bf16.msra.mxu0 0
    %689 = vmatprep.subr.bf16.mxu0 0
    %690 = vmatpush2.bf16.msra.mxu0 0
    %691 = vmatprep.mubr.bf16.mxu0 0
    %692 = vmatmul.mubr.bf16.gmra.mxu0 %v653
    %v693 = vpop.f32.mrf.mxu0
    %v694 = vadd.f32 0.0, %v693
    %v695 = vpop.f32.mrf.mxu0
    %v696 = vpop.f32.mrf.mxu0
    %v697 = vpop.f32.mrf.mxu0
    %698 = vdwg.mxu0
    %v704 = vunpack.c.l.b16 %v620
    %v705 = vunpack.c.l.b16 %v621
    %v706 = vunpack.c.l.b16 %v622
    %v707 = vunpack.c.l.b16 %v623
    %v708 = vunpack.c.l.b16 %v624
    %v709 = vpack.c.b16 %v705, %v704
    %v710 = vpack.c.b16 %v707, %v706
    %v711 = vpack.c.b16 %v708, %v708
    %vm712 = vcmask 1044480
    %v713 = vrot.slane %v709, 3
    %v714 = vrot.slane %v710, 3
    %v715 = vsel %vm712, %v713, %v714
    %v716 = vrot.slane %v711, 3
    %v717 = vsel %vm712, %v714, %v716
    %v720 = vsel %vm651, %v625, 0
    %v723 = vsel %vm655, %v717, 0
    %725 = vmatprep.subr.bf16.mxu0 0
    %726 = vmatpush1.bf16.msra.mxu0 0
    %727 = vmatprep.subr.bf16.mxu0 0
    %728 = vmatpush1.bf16.msra.mxu0 0
    %729 = vmatprep.subr.bf16.mxu0 0
    %730 = vmatpush1.bf16.msra.mxu0 0
    %731 = vmatprep.subr.bf16.mxu0 0
    %732 = vmatpush1.bf16.msra.mxu0 0
    %733 = vmatprep.subr.bf16.mxu0 0
    %734 = vmatpush1.bf16.msra.mxu0 0
    %735 = vmatprep.subr.bf16.mxu0 0
    %736 = vmatpush1.bf16.msra.mxu0 0
    %737 = vmatprep.subr.bf16.mxu0 0
    %738 = vmatpush1.bf16.msra.mxu0 %v723
    %739 = vmatprep.subr.bf16.mxu0 0
    %740 = vmatpush1.bf16.msra.mxu0 %v715
    %741 = vmatprep.subr.bf16.mxu0 0
    %742 = vmatpush2.bf16.msra.mxu0 0
    %743 = vmatprep.subr.bf16.mxu0 0
    %744 = vmatpush2.bf16.msra.mxu0 0
    %745 = vmatprep.subr.bf16.mxu0 0
    %746 = vmatpush2.bf16.msra.mxu0 0
    %747 = vmatprep.subr.bf16.mxu0 0
    %748 = vmatpush2.bf16.msra.mxu0 0
    %749 = vmatprep.subr.bf16.mxu0 0
    %750 = vmatpush2.bf16.msra.mxu0 0
    %751 = vmatprep.subr.bf16.mxu0 0
    %752 = vmatpush2.bf16.msra.mxu0 0
    %753 = vmatprep.subr.bf16.mxu0 0
    %754 = vmatpush2.bf16.msra.mxu0 0
    %755 = vmatprep.subr.bf16.mxu0 0
    %756 = vmatpush2.bf16.msra.mxu0 0
    %757 = vmatprep.mubr.bf16.mxu0 0
    %758 = vmatmul.mubr.bf16.gmra.mxu0 %v720
    %v759 = vpop.f32.mrf.mxu0
    %v760 = vadd.f32 %v694, %v759
    %v761 = vpop.f32.mrf.mxu0
    %v762 = vpop.f32.mrf.mxu0
    %v763 = vpop.f32.mrf.mxu0
    %764 = vdwg.mxu0
    %v765 = vld [vmem:[%s2 + $0x58] sm:$0xe]
    %v766 = vld [vmem:[%s2 + $0x5c] sm:$0xf]
    %v767 = vld [vmem:[%s2 + $0x60] sm:$0xf]
    %v768 = vld [vmem:[%s2 + $0x64] sm:$0xf]
    %v769 = vshrl.u32 %v625, 16
    %v771 = vshll.u32 %v625, 16
    %v773 = vrot.slane %v771, 1
    %v774 = vor.u32 %v769, %v773
    %v779 = vunpack.c.l.b16 %v765
    %v780 = vunpack.c.l.b16 %v766
    %v781 = vunpack.c.l.b16 %v767
    %v782 = vunpack.c.l.b16 %v768
    %v783 = vpack.c.b16 %v780, %v779
    %v784 = vpack.c.b16 %v782, %v781
    %v785 = vrot.slane %v783, 1
    %v786 = vrot.slane %v784, 1
    %v787 = vsel %vm444, %v785, %v786
    %v790 = vsel %vm651, %v774, 0
    %v793 = vsel %vm655, %v786, 0
    %795 = vmatprep.subr.bf16.mxu0 0
    %796 = vmatpush1.bf16.msra.mxu0 0
    %797 = vmatprep.subr.bf16.mxu0 0
    %798 = vmatpush1.bf16.msra.mxu0 0
    %799 = vmatprep.subr.bf16.mxu0 0
    %800 = vmatpush1.bf16.msra.mxu0 0
    %801 = vmatprep.subr.bf16.mxu0 0
    %802 = vmatpush1.bf16.msra.mxu0 0
    %803 = vmatprep.subr.bf16.mxu0 0
    %804 = vmatpush1.bf16.msra.mxu0 0
    %805 = vmatprep.subr.bf16.mxu0 0
    %806 = vmatpush1.bf16.msra.mxu0 0
    %807 = vmatprep.subr.bf16.mxu0 0
    %808 = vmatpush1.bf16.msra.mxu0 %v793
    %809 = vmatprep.subr.bf16.mxu0 0
    %810 = vmatpush1.bf16.msra.mxu0 %v787
    %811 = vmatprep.subr.bf16.mxu0 0
    %812 = vmatpush2.bf16.msra.mxu0 0
    %813 = vmatprep.subr.bf16.mxu0 0
    %814 = vmatpush2.bf16.msra.mxu0 0
    %815 = vmatprep.subr.bf16.mxu0 0
    %816 = vmatpush2.bf16.msra.mxu0 0
    %817 = vmatprep.subr.bf16.mxu0 0
    %818 = vmatpush2.bf16.msra.mxu0 0
    %819 = vmatprep.subr.bf16.mxu0 0
    %820 = vmatpush2.bf16.msra.mxu0 0
    %821 = vmatprep.subr.bf16.mxu0 0
    %822 = vmatpush2.bf16.msra.mxu0 0
    %823 = vmatprep.subr.bf16.mxu0 0
    %824 = vmatpush2.bf16.msra.mxu0 0
    %825 = vmatprep.subr.bf16.mxu0 0
    %826 = vmatpush2.bf16.msra.mxu0 0
    %827 = vmatprep.mubr.bf16.mxu0 0
    %828 = vmatmul.mubr.bf16.gmra.mxu0 %v790
    %v829 = vpop.f32.mrf.mxu0
    %v830 = vadd.f32 0.0, %v829
    %v831 = vpop.f32.mrf.mxu0
    %v832 = vpop.f32.mrf.mxu0
    %v833 = vpop.f32.mrf.mxu0
    %834 = vdwg.mxu0
    %v835 = vadd.f32 %v760, %v830
    %v836 = vld [vmem:[%s2 + $0x68] sm:$0xf]
    %v837 = vld [vmem:[%s2 + $0x6c] sm:$0xf]
    %v838 = vld [vmem:[%s2 + $0x70] sm:$0xf]
    %v839 = vld [vmem:[%s2 + $0x74] sm:$0x7]
    %v840 = vshrl.u32 %v631, 16
    %v842 = vshll.u32 %v631, 16
    %v844 = vrot.slane %v842, 1
    %v845 = vor.u32 %v840, %v844
    %v850 = vunpack.c.l.b16 %v836
    %v851 = vunpack.c.l.b16 %v837
    %v852 = vunpack.c.l.b16 %v838
    %v853 = vunpack.c.l.b16 %v839
    %v854 = vpack.c.b16 %v851, %v850
    %v855 = vpack.c.b16 %v853, %v852
    %v858 = vsel %vm651, %v845, 0
    %v861 = vsel %vm655, %v855, 0
    %863 = vmatprep.subr.bf16.mxu0 0
    %864 = vmatpush1.bf16.msra.mxu0 0
    %865 = vmatprep.subr.bf16.mxu0 0
    %866 = vmatpush1.bf16.msra.mxu0 0
    %867 = vmatprep.subr.bf16.mxu0 0
    %868 = vmatpush1.bf16.msra.mxu0 0
    %869 = vmatprep.subr.bf16.mxu0 0
    %870 = vmatpush1.bf16.msra.mxu0 0
    %871 = vmatprep.subr.bf16.mxu0 0
    %872 = vmatpush1.bf16.msra.mxu0 0
    %873 = vmatprep.subr.bf16.mxu0 0
    %874 = vmatpush1.bf16.msra.mxu0 0
    %875 = vmatprep.subr.bf16.mxu0 0
    %876 = vmatpush1.bf16.msra.mxu0 %v861
    %877 = vmatprep.subr.bf16.mxu0 0
    %878 = vmatpush1.bf16.msra.mxu0 %v854
    %879 = vmatprep.subr.bf16.mxu0 0
    %880 = vmatpush2.bf16.msra.mxu0 0
    %881 = vmatprep.subr.bf16.mxu0 0
    %882 = vmatpush2.bf16.msra.mxu0 0
    %883 = vmatprep.subr.bf16.mxu0 0
    %884 = vmatpush2.bf16.msra.mxu0 0
    %885 = vmatprep.subr.bf16.mxu0 0
    %886 = vmatpush2.bf16.msra.mxu0 0
    %887 = vmatprep.subr.bf16.mxu0 0
    %888 = vmatpush2.bf16.msra.mxu0 0
    %889 = vmatprep.subr.bf16.mxu0 0
    %890 = vmatpush2.bf16.msra.mxu0 0
    %891 = vmatprep.subr.bf16.mxu0 0
    %892 = vmatpush2.bf16.msra.mxu0 0
    %893 = vmatprep.subr.bf16.mxu0 0
    %894 = vmatpush2.bf16.msra.mxu0 0
    %895 = vmatprep.mubr.bf16.mxu0 0
    %896 = vmatmul.mubr.bf16.gmra.mxu0 %v858
    %v897 = vpop.f32.mrf.mxu0
    %v898 = vadd.f32 0.0, %v897
    %v899 = vpop.f32.mrf.mxu0
    %v900 = vpop.f32.mrf.mxu0
    %v901 = vpop.f32.mrf.mxu0
    %902 = vdwg.mxu0
    %v903 = vadd.f32 %v835, %v898
    %v904 = vld [vmem:[%s2 + $0x74] sm:$0x8]
    %v905 = vunpack.c.l.bf16 %v904
    %v906 = vlaneseq
    %v907 = vshrl.u32 %v906, 7
    %v908 = vsub.s32 6, %v907
    %v909 = vrot.slane %v905, %v908
    %v910 = vadd.f32 %v903, %v909
    %vm911 = vcmp.gt.f32.partialorder %v910, 0.0
    %v912 = vmul.f32 %v910, 1.442695
    %v913 = vpow.pop %v912
    %v914 = vsub.f32 %v913, 1.0
    %v915 = vsel %vm911, %v910, %v914
    %v916 = vld [vmem:[%s2 + $0x78] sm:$0xf]
    %v917 = vld [vmem:[%s2 + $0x7c] sm:$0xf]
    %v918 = vld [vmem:[%s2 + $0x80] sm:$0x3]
    %v919 = vpack.c.bf16 %v915, %v915
    %v920 = vld [vmem:[%s2 + $0x80] sm:$0xc]
    %v921 = vld [vmem:[%s2 + $0x84] sm:$0xf]
    %v922 = vld [vmem:[%s2 + $0x88] sm:$0xf]
    %v924 = vshrl.u32 %v919, 16
    %v926 = vshll.u32 %v919, 16
    %v928 = vrot.slane %v926, 1
    %v929 = vor.u32 %v924, %v928
    %v933 = vunpack.c.l.b16 %v920
    %v934 = vunpack.c.l.b16 %v921
    %v935 = vunpack.c.l.b16 %v922
    %v936 = vpack.c.b16 %v934, %v933
    %v937 = vpack.c.b16 %v935, %v935
    %v938 = vrot.slane %v936, 2
    %v939 = vrot.slane %v937, 2
    %v940 = vsel %vm517, %v938, %v939
    %vm942 = vcmask 162816
    %v944 = vsel %vm942, %v929, 0
    %vm946 = vcmask 1041408
    %v948 = vsel %vm946, %v939, 0
    %950 = vmatprep.subr.bf16.mxu0 0
    %951 = vmatpush1.bf16.msra.mxu0 0
    %952 = vmatprep.subr.bf16.mxu0 0
    %953 = vmatpush1.bf16.msra.mxu0 0
    %954 = vmatprep.subr.bf16.mxu0 0
    %955 = vmatpush1.bf16.msra.mxu0 0
    %956 = vmatprep.subr.bf16.mxu0 0
    %957 = vmatpush1.bf16.msra.mxu0 0
    %958 = vmatprep.subr.bf16.mxu0 0
    %959 = vmatpush1.bf16.msra.mxu0 0
    %960 = vmatprep.subr.bf16.mxu0 0
    %961 = vmatpush1.bf16.msra.mxu0 0
    %962 = vmatprep.subr.bf16.mxu0 0
    %963 = vmatpush1.bf16.msra.mxu0 %v948
    %964 = vmatprep.subr.bf16.mxu0 0
    %965 = vmatpush1.bf16.msra.mxu0 %v940
    %966 = vmatprep.subr.bf16.mxu0 0
    %967 = vmatpush2.bf16.msra.mxu0 0
    %968 = vmatprep.subr.bf16.mxu0 0
    %969 = vmatpush2.bf16.msra.mxu0 0
    %970 = vmatprep.subr.bf16.mxu0 0
    %971 = vmatpush2.bf16.msra.mxu0 0
    %972 = vmatprep.subr.bf16.mxu0 0
    %973 = vmatpush2.bf16.msra.mxu0 0
    %974 = vmatprep.subr.bf16.mxu0 0
    %975 = vmatpush2.bf16.msra.mxu0 0
    %976 = vmatprep.subr.bf16.mxu0 0
    %977 = vmatpush2.bf16.msra.mxu0 0
    %978 = vmatprep.subr.bf16.mxu0 0
    %979 = vmatpush2.bf16.msra.mxu0 0
    %980 = vmatprep.subr.bf16.mxu0 0
    %981 = vmatpush2.bf16.msra.mxu0 0
    %982 = vmatprep.mubr.bf16.mxu0 0
    %983 = vmatmul.mubr.bf16.gmra.mxu0 %v944
    %v984 = vpop.f32.mrf.mxu0
    %v985 = vadd.f32 0.0, %v984
    %v986 = vpop.f32.mrf.mxu0
    %v987 = vpop.f32.mrf.mxu0
    %v988 = vpop.f32.mrf.mxu0
    %989 = vdwg.mxu0
    %v993 = vunpack.c.l.b16 %v916
    %v994 = vunpack.c.l.b16 %v917
    %v995 = vunpack.c.l.b16 %v918
    %v996 = vpack.c.b16 %v994, %v993
    %v997 = vpack.c.b16 %v995, %v995
    %v999 = vsel %vm942, %v919, 0
    %v1002 = vsel %vm946, %v997, 0
    %1004 = vmatprep.subr.bf16.mxu0 0
    %1005 = vmatpush1.bf16.msra.mxu0 0
    %1006 = vmatprep.subr.bf16.mxu0 0
    %1007 = vmatpush1.bf16.msra.mxu0 0
    %1008 = vmatprep.subr.bf16.mxu0 0
    %1009 = vmatpush1.bf16.msra.mxu0 0
    %1010 = vmatprep.subr.bf16.mxu0 0
    %1011 = vmatpush1.bf16.msra.mxu0 0
    %1012 = vmatprep.subr.bf16.mxu0 0
    %1013 = vmatpush1.bf16.msra.mxu0 0
    %1014 = vmatprep.subr.bf16.mxu0 0
    %1015 = vmatpush1.bf16.msra.mxu0 0
    %1016 = vmatprep.subr.bf16.mxu0 0
    %1017 = vmatpush1.bf16.msra.mxu0 %v1002
    %1018 = vmatprep.subr.bf16.mxu0 0
    %1019 = vmatpush1.bf16.msra.mxu0 %v996
    %1020 = vmatprep.subr.bf16.mxu0 0
    %1021 = vmatpush2.bf16.msra.mxu0 0
    %1022 = vmatprep.subr.bf16.mxu0 0
    %1023 = vmatpush2.bf16.msra.mxu0 0
    %1024 = vmatprep.subr.bf16.mxu0 0
    %1025 = vmatpush2.bf16.msra.mxu0 0
    %1026 = vmatprep.subr.bf16.mxu0 0
    %1027 = vmatpush2.bf16.msra.mxu0 0
    %1028 = vmatprep.subr.bf16.mxu0 0
    %1029 = vmatpush2.bf16.msra.mxu0 0
    %1030 = vmatprep.subr.bf16.mxu0 0
    %1031 = vmatpush2.bf16.msra.mxu0 0
    %1032 = vmatprep.subr.bf16.mxu0 0
    %1033 = vmatpush2.bf16.msra.mxu0 0
    %1034 = vmatprep.subr.bf16.mxu0 0
    %1035 = vmatpush2.bf16.msra.mxu0 0
    %1036 = vmatprep.mubr.bf16.mxu0 0
    %1037 = vmatmul.mubr.bf16.gmra.mxu0 %v999
    %v1038 = vpop.f32.mrf.mxu0
    %v1039 = vadd.f32 %v985, %v1038
    %v1040 = vpop.f32.mrf.mxu0
    %v1041 = vpop.f32.mrf.mxu0
    %v1042 = vpop.f32.mrf.mxu0
    %1043 = vdwg.mxu0
    %v1044 = vld [vmem:[%s2 + $0x8c] sm:$0x1]
    %v1045 = vunpack.c.l.bf16 %v1044
    %v1046 = vlaneseq
    %v1047 = vshrl.u32 %v1046, 7
    %v1048 = vsub.s32 0, %v1047
    %v1049 = vrot.slane %v1045, %v1048
    %v1050 = vadd.f32 %v1039, %v1049
    %vm1051 = vcmp.gt.f32.partialorder %v1050, 0.0
    %v1052 = vmul.f32 %v1050, 1.442695
    %v1053 = vpow.pop %v1052
    %v1054 = vsub.f32 %v1053, 1.0
    %v1055 = vsel %vm1051, %v1050, %v1054
    %v1056 = vld [vmem:[%s2 + $0x9c] sm:$0x1]
    %v1057 = vunpack.c.l.bf16 %v1056
    %v1058 = vld [vmem:[%s2 + $0x8c] sm:$0xe]
    %v1059 = vld [vmem:[%s2 + $0x90] sm:$0x3]
    %v1060 = vpack.c.bf16 %v1055, %v1055
    %v1063 = vunpack.c.l.b16 %v1058
    %v1064 = vunpack.c.l.b16 %v1059
    %v1065 = vpack.c.b16 %v1064, %v1063
    %v1066 = vrot.slane %v1065, 1
    %vm1067 = vcmask 80896
    %v1069 = vsel %vm1067, %v1060, 0
    %vm1071 = vcmask 1044480
    %v1073 = vsel %vm1071, %v1066, 0
    %1075 = vmatprep.subr.bf16.mxu0 0
    %1076 = vmatpush1.bf16.msra.mxu0 0
    %1077 = vmatprep.subr.bf16.mxu0 0
    %1078 = vmatpush1.bf16.msra.mxu0 0
    %1079 = vmatprep.subr.bf16.mxu0 0
    %1080 = vmatpush1.bf16.msra.mxu0 0
    %1081 = vmatprep.subr.bf16.mxu0 0
    %1082 = vmatpush1.bf16.msra.mxu0 0
    %1083 = vmatprep.subr.bf16.mxu0 0
    %1084 = vmatpush1.bf16.msra.mxu0 0
    %1085 = vmatprep.subr.bf16.mxu0 0
    %1086 = vmatpush1.bf16.msra.mxu0 0
    %1087 = vmatprep.subr.bf16.mxu0 0
    %1088 = vmatpush1.bf16.msra.mxu0 0
    %1089 = vmatprep.subr.bf16.mxu0 0
    %1090 = vmatpush1.bf16.msra.mxu0 %v1073
    %1091 = vmatprep.subr.bf16.mxu0 0
    %1092 = vmatpush2.bf16.msra.mxu0 0
    %1093 = vmatprep.subr.bf16.mxu0 0
    %1094 = vmatpush2.bf16.msra.mxu0 0
    %1095 = vmatprep.subr.bf16.mxu0 0
    %1096 = vmatpush2.bf16.msra.mxu0 0
    %1097 = vmatprep.subr.bf16.mxu0 0
    %1098 = vmatpush2.bf16.msra.mxu0 0
    %1099 = vmatprep.subr.bf16.mxu0 0
    %1100 = vmatpush2.bf16.msra.mxu0 0
    %1101 = vmatprep.subr.bf16.mxu0 0
    %1102 = vmatpush2.bf16.msra.mxu0 0
    %1103 = vmatprep.subr.bf16.mxu0 0
    %1104 = vmatpush2.bf16.msra.mxu0 0
    %1105 = vmatprep.subr.bf16.mxu0 0
    %1106 = vmatpush2.bf16.msra.mxu0 0
    %1107 = vmatprep.mubr.bf16.mxu0 0
    %1108 = vmatmul.mubr.bf16.gmra.mxu0 %v1069
    %v1109 = vpop.f32.mrf.mxu0
    %v1110 = vadd.f32 0.0, %v1109
    %v1111 = vpop.f32.mrf.mxu0
    %v1112 = vpop.f32.mrf.mxu0
    %v1113 = vpop.f32.mrf.mxu0
    %1114 = vdwg.mxu0
    %v1115 = vadd.f32 %v1057, %v1110
    %v1116 = vld [vmem:[%s2 + $0x90] sm:$0xc]
    %v1117 = vld [vmem:[%s2 + $0x94] sm:$0x7]
    %v1118 = vshrl.u32 %v1060, 16
    %v1122 = vunpack.c.l.b16 %v1116
    %v1123 = vunpack.c.l.b16 %v1117
    %v1124 = vpack.c.b16 %v1123, %v1122
    %v1125 = vrot.slane %v1124, 2
    %v1127 = vsel %vm1067, %v1118, 0
    %v1130 = vsel %vm1071, %v1125, 0
    %1132 = vmatprep.subr.bf16.mxu0 0
    %1133 = vmatpush1.bf16.msra.mxu0 0
    %1134 = vmatprep.subr.bf16.mxu0 0
    %1135 = vmatpush1.bf16.msra.mxu0 0
    %1136 = vmatprep.subr.bf16.mxu0 0
    %1137 = vmatpush1.bf16.msra.mxu0 0
    %1138 = vmatprep.subr.bf16.mxu0 0
    %1139 = vmatpush1.bf16.msra.mxu0 0
    %1140 = vmatprep.subr.bf16.mxu0 0
    %1141 = vmatpush1.bf16.msra.mxu0 0
    %1142 = vmatprep.subr.bf16.mxu0 0
    %1143 = vmatpush1.bf16.msra.mxu0 0
    %1144 = vmatprep.subr.bf16.mxu0 0
    %1145 = vmatpush1.bf16.msra.mxu0 0
    %1146 = vmatprep.subr.bf16.mxu0 0
    %1147 = vmatpush1.bf16.msra.mxu0 %v1130
    %1148 = vmatprep.subr.bf16.mxu0 0
    %1149 = vmatpush2.bf16.msra.mxu0 0
    %1150 = vmatprep.subr.bf16.mxu0 0
    %1151 = vmatpush2.bf16.msra.mxu0 0
    %1152 = vmatprep.subr.bf16.mxu0 0
    %1153 = vmatpush2.bf16.msra.mxu0 0
    %1154 = vmatprep.subr.bf16.mxu0 0
    %1155 = vmatpush2.bf16.msra.mxu0 0
    %1156 = vmatprep.subr.bf16.mxu0 0
    %1157 = vmatpush2.bf16.msra.mxu0 0
    %1158 = vmatprep.subr.bf16.mxu0 0
    %1159 = vmatpush2.bf16.msra.mxu0 0
    %1160 = vmatprep.subr.bf16.mxu0 0
    %1161 = vmatpush2.bf16.msra.mxu0 0
    %1162 = vmatprep.subr.bf16.mxu0 0
    %1163 = vmatpush2.bf16.msra.mxu0 0
    %1164 = vmatprep.mubr.bf16.mxu0 0
    %1165 = vmatmul.mubr.bf16.gmra.mxu0 %v1127
    %v1166 = vpop.f32.mrf.mxu0
    %v1167 = vadd.f32 0.0, %v1166
    %v1168 = vpop.f32.mrf.mxu0
    %v1169 = vpop.f32.mrf.mxu0
    %v1170 = vpop.f32.mrf.mxu0
    %1171 = vdwg.mxu0
    %v1172 = vadd.f32 %v1115, %v1167
    %v1173 = vld [vmem:[%s2 + $0x94] sm:$0x8]
    %v1174 = vld [vmem:[%s2 + $0x98] sm:$0xf]
    %v1176 = vrot.slane %v1060, 1
    %v1179 = vunpack.c.l.b16 %v1173
    %v1180 = vunpack.c.l.b16 %v1174
    %v1181 = vpack.c.b16 %v1180, %v1179
    %v1182 = vrot.slane %v1181, 3
    %v1184 = vsel %vm1067, %v1176, 0
    %v1187 = vsel %vm1071, %v1182, 0
    %1189 = vmatprep.subr.bf16.mxu0 0
    %1190 = vmatpush1.bf16.msra.mxu0 0
    %1191 = vmatprep.subr.bf16.mxu0 0
    %1192 = vmatpush1.bf16.msra.mxu0 0
    %1193 = vmatprep.subr.bf16.mxu0 0
    %1194 = vmatpush1.bf16.msra.mxu0 0
    %1195 = vmatprep.subr.bf16.mxu0 0
    %1196 = vmatpush1.bf16.msra.mxu0 0
    %1197 = vmatprep.subr.bf16.mxu0 0
    %1198 = vmatpush1.bf16.msra.mxu0 0
    %1199 = vmatprep.subr.bf16.mxu0 0
    %1200 = vmatpush1.bf16.msra.mxu0 0
    %1201 = vmatprep.subr.bf16.mxu0 0
    %1202 = vmatpush1.bf16.msra.mxu0 0
    %1203 = vmatprep.subr.bf16.mxu0 0
    %1204 = vmatpush1.bf16.msra.mxu0 %v1187
    %1205 = vmatprep.subr.bf16.mxu0 0
    %1206 = vmatpush2.bf16.msra.mxu0 0
    %1207 = vmatprep.subr.bf16.mxu0 0
    %1208 = vmatpush2.bf16.msra.mxu0 0
    %1209 = vmatprep.subr.bf16.mxu0 0
    %1210 = vmatpush2.bf16.msra.mxu0 0
    %1211 = vmatprep.subr.bf16.mxu0 0
    %1212 = vmatpush2.bf16.msra.mxu0 0
    %1213 = vmatprep.subr.bf16.mxu0 0
    %1214 = vmatpush2.bf16.msra.mxu0 0
    %1215 = vmatprep.subr.bf16.mxu0 0
    %1216 = vmatpush2.bf16.msra.mxu0 0
    %1217 = vmatprep.subr.bf16.mxu0 0
    %1218 = vmatpush2.bf16.msra.mxu0 0
    %1219 = vmatprep.subr.bf16.mxu0 0
    %1220 = vmatpush2.bf16.msra.mxu0 0
    %1221 = vmatprep.mubr.bf16.mxu0 0
    %1222 = vmatmul.mubr.bf16.gmra.mxu0 %v1184
    %v1223 = vpop.f32.mrf.mxu0
    %v1224 = vadd.f32 0.0, %v1223
    %v1225 = vpop.f32.mrf.mxu0
    %v1226 = vpop.f32.mrf.mxu0
    %v1227 = vpop.f32.mrf.mxu0
    %1228 = vdwg.mxu0
    %v1229 = vadd.f32 %v1172, %v1224
    %vm1230 = vcmp.gt.f32.partialorder %v1229, 0.0
    %v1231 = vmul.f32 %v1229, 1.442695
    %v1232 = vpow.pop %v1231
    %v1233 = vsub.f32 %v1232, 1.0
    %v1234 = vsel %vm1230, %v1229, %v1233
    %v1235 = vld [vmem:[%s6] sm:$0xff]
    %v1236 = vld [vmem:[%s6 + $0x8] sm:$0xff]
    %v1237 = vld [vmem:[%s6 + $0x10] sm:$0xff]
    %v1238 = vld [vmem:[%s6 + $0x18] sm:$0xff]
    %v1239 = vld [vmem:[%s6 + $0x20] sm:$0xff]
    %v1240 = vld [vmem:[%s6 + $0x28] sm:$0xff]
    %v1241 = vld [vmem:[%s6 + $0x30] sm:$0xff]
    %v1242 = vld [vmem:[%s6 + $0x38] sm:$0xff]
    %v1243 = vld [vmem:[%s6 + $0x40] sm:$0xff]
    %v1244 = vld [vmem:[%s6 + $0x48] sm:$0xff]
    %v1245 = vld [vmem:[%s6 + $0x50] sm:$0xff]
    %v1246 = vld [vmem:[%s6 + $0x58] sm:$0xff]
    %1248 = vrot.lane.b32.xlu0 %v68, 32
    %v1249 = vpop.permute.xlu0 %1248
    %v1258 = vunpack.c.l.b16 %v1239
    %v1259 = vunpack.c.h.b16 %v1239
    %v1260 = vunpack.c.l.b16 %v1240
    %v1261 = vunpack.c.h.b16 %v1240
    %v1262 = vunpack.c.l.b16 %v1241
    %v1263 = vunpack.c.h.b16 %v1241
    %v1264 = vunpack.c.l.b16 %v1242
    %v1265 = vunpack.c.h.b16 %v1242
    %v1266 = vunpack.c.l.b16 %v1243
    %v1267 = vunpack.c.h.b16 %v1243
    %v1268 = vunpack.c.l.b16 %v1244
    %v1269 = vunpack.c.h.b16 %v1244
    %v1270 = vunpack.c.l.b16 %v1245
    %v1271 = vunpack.c.h.b16 %v1245
    %v1272 = vunpack.c.l.b16 %v1246
    %v1273 = vunpack.c.h.b16 %v1246
    %v1274 = vpack.c.b16 %v1262, %v1258
    %v1275 = vpack.c.b16 %v1263, %v1259
    %v1276 = vpack.c.b16 %v1264, %v1260
    %v1277 = vpack.c.b16 %v1265, %v1261
    %v1278 = vpack.c.b16 %v1270, %v1266
    %v1279 = vpack.c.b16 %v1271, %v1267
    %v1280 = vpack.c.b16 %v1272, %v1268
    %v1281 = vpack.c.b16 %v1273, %v1269
    %v1291 = vsel %vm455, %v1249, 0
    %1293 = vmatprep.subr.bf16.mxu0 0
    %1294 = vmatpush1.bf16.msra.mxu0 0
    %1295 = vmatprep.subr.bf16.mxu0 0
    %1296 = vmatpush1.bf16.msra.mxu0 0
    %1297 = vmatprep.subr.bf16.mxu0 0
    %1298 = vmatpush1.bf16.msra.mxu0 0
    %1299 = vmatprep.subr.bf16.mxu0 0
    %1300 = vmatpush1.bf16.msra.mxu0 0
    %1301 = vmatprep.subr.bf16.mxu0 0
    %1302 = vmatpush1.bf16.msra.mxu0 0
    %1303 = vmatprep.subr.bf16.mxu0 0
    %1304 = vmatpush1.bf16.msra.mxu0 0
    %1305 = vmatprep.subr.bf16.mxu0 %v1279
    %1306 = vmatpush1.bf16.msra.mxu0 %v1278
    %1307 = vmatprep.subr.bf16.mxu0 %v1275
    %1308 = vmatpush1.bf16.msra.mxu0 %v1274
    %1309 = vmatprep.subr.bf16.mxu0 0
    %1310 = vmatpush2.bf16.msra.mxu0 0
    %1311 = vmatprep.subr.bf16.mxu0 0
    %1312 = vmatpush2.bf16.msra.mxu0 0
    %1313 = vmatprep.subr.bf16.mxu0 0
    %1314 = vmatpush2.bf16.msra.mxu0 0
    %1315 = vmatprep.subr.bf16.mxu0 0
    %1316 = vmatpush2.bf16.msra.mxu0 0
    %1317 = vmatprep.subr.bf16.mxu0 0
    %1318 = vmatpush2.bf16.msra.mxu0 0
    %1319 = vmatprep.subr.bf16.mxu0 0
    %1320 = vmatpush2.bf16.msra.mxu0 0
    %1321 = vmatprep.subr.bf16.mxu0 0
    %1322 = vmatpush2.bf16.msra.mxu0 0
    %1323 = vmatprep.subr.bf16.mxu0 0
    %1324 = vmatpush2.bf16.msra.mxu0 0
    %1325 = vmatprep.mubr.bf16.mxu0 0
    %1326 = vmatmul.mubr.bf16.gmra.mxu0 %v1291
    %v1327 = vpop.f32.mrf.mxu0
    %v1328 = vadd.f32 0.0, %v1327
    %v1329 = vpop.f32.mrf.mxu0
    %v1330 = vadd.f32 0.0, %v1329
    %v1331 = vpop.f32.mrf.mxu0
    %v1332 = vpop.f32.mrf.mxu0
    %1333 = vdwg.mxu0
    %1334 = vmatprep.subr.bf16.mxu0 0
    %1335 = vmatpush1.bf16.msra.mxu0 0
    %1336 = vmatprep.subr.bf16.mxu0 0
    %1337 = vmatpush1.bf16.msra.mxu0 0
    %1338 = vmatprep.subr.bf16.mxu0 0
    %1339 = vmatpush1.bf16.msra.mxu0 0
    %1340 = vmatprep.subr.bf16.mxu0 0
    %1341 = vmatpush1.bf16.msra.mxu0 0
    %1342 = vmatprep.subr.bf16.mxu0 0
    %1343 = vmatpush1.bf16.msra.mxu0 0
    %1344 = vmatprep.subr.bf16.mxu0 0
    %1345 = vmatpush1.bf16.msra.mxu0 0
    %1346 = vmatprep.subr.bf16.mxu0 %v1281
    %1347 = vmatpush1.bf16.msra.mxu0 %v1280
    %1348 = vmatprep.subr.bf16.mxu0 %v1277
    %1349 = vmatpush1.bf16.msra.mxu0 %v1276
    %1350 = vmatprep.subr.bf16.mxu0 0
    %1351 = vmatpush2.bf16.msra.mxu0 0
    %1352 = vmatprep.subr.bf16.mxu0 0
    %1353 = vmatpush2.bf16.msra.mxu0 0
    %1354 = vmatprep.subr.bf16.mxu0 0
    %1355 = vmatpush2.bf16.msra.mxu0 0
    %1356 = vmatprep.subr.bf16.mxu0 0
    %1357 = vmatpush2.bf16.msra.mxu0 0
    %1358 = vmatprep.subr.bf16.mxu0 0
    %1359 = vmatpush2.bf16.msra.mxu0 0
    %1360 = vmatprep.subr.bf16.mxu0 0
    %1361 = vmatpush2.bf16.msra.mxu0 0
    %1362 = vmatprep.subr.bf16.mxu0 0
    %1363 = vmatpush2.bf16.msra.mxu0 0
    %1364 = vmatprep.subr.bf16.mxu0 0
    %1365 = vmatpush2.bf16.msra.mxu0 0
    %1366 = vmatprep.mubr.bf16.mxu0 0
    %1367 = vmatmul.mubr.bf16.gmra.mxu0 %v1291
    %v1368 = vpop.f32.mrf.mxu0
    %v1369 = vadd.f32 0.0, %v1368
    %v1370 = vpop.f32.mrf.mxu0
    %v1371 = vadd.f32 0.0, %v1370
    %v1372 = vpop.f32.mrf.mxu0
    %v1373 = vpop.f32.mrf.mxu0
    %1374 = vdwg.mxu0
    %v1379 = vunpack.c.l.b16 %v1235
    %v1380 = vunpack.c.h.b16 %v1235
    %v1381 = vunpack.c.l.b16 %v1236
    %v1382 = vunpack.c.h.b16 %v1236
    %v1383 = vunpack.c.l.b16 %v1237
    %v1384 = vunpack.c.h.b16 %v1237
    %v1385 = vunpack.c.l.b16 %v1238
    %v1386 = vunpack.c.h.b16 %v1238
    %v1387 = vpack.c.b16 %v1383, %v1379
    %v1388 = vpack.c.b16 %v1384, %v1380
    %v1389 = vpack.c.b16 %v1385, %v1381
    %v1390 = vpack.c.b16 %v1386, %v1382
    %v1396 = vsel %vm522, %v55, 0
    %1398 = vmatprep.subr.bf16.mxu0 0
    %1399 = vmatpush1.bf16.msra.mxu0 0
    %1400 = vmatprep.subr.bf16.mxu0 0
    %1401 = vmatpush1.bf16.msra.mxu0 0
    %1402 = vmatprep.subr.bf16.mxu0 0
    %1403 = vmatpush1.bf16.msra.mxu0 0
    %1404 = vmatprep.subr.bf16.mxu0 0
    %1405 = vmatpush1.bf16.msra.mxu0 0
    %1406 = vmatprep.subr.bf16.mxu0 0
    %1407 = vmatpush1.bf16.msra.mxu0 0
    %1408 = vmatprep.subr.bf16.mxu0 0
    %1409 = vmatpush1.bf16.msra.mxu0 0
    %1410 = vmatprep.subr.bf16.mxu0 0
    %1411 = vmatpush1.bf16.msra.mxu0 0
    %1412 = vmatprep.subr.bf16.mxu0 %v1388
    %1413 = vmatpush1.bf16.msra.mxu0 %v1387
    %1414 = vmatprep.subr.bf16.mxu0 0
    %1415 = vmatpush2.bf16.msra.mxu0 0
    %1416 = vmatprep.subr.bf16.mxu0 0
    %1417 = vmatpush2.bf16.msra.mxu0 0
    %1418 = vmatprep.subr.bf16.mxu0 0
    %1419 = vmatpush2.bf16.msra.mxu0 0
    %1420 = vmatprep.subr.bf16.mxu0 0
    %1421 = vmatpush2.bf16.msra.mxu0 0
    %1422 = vmatprep.subr.bf16.mxu0 0
    %1423 = vmatpush2.bf16.msra.mxu0 0
    %1424 = vmatprep.subr.bf16.mxu0 0
    %1425 = vmatpush2.bf16.msra.mxu0 0
    %1426 = vmatprep.subr.bf16.mxu0 0
    %1427 = vmatpush2.bf16.msra.mxu0 0
    %1428 = vmatprep.subr.bf16.mxu0 0
    %1429 = vmatpush2.bf16.msra.mxu0 0
    %1430 = vmatprep.mubr.bf16.mxu0 0
    %1431 = vmatmul.mubr.bf16.gmra.mxu0 %v1396
    %v1432 = vpop.f32.mrf.mxu0
    %v1433 = vadd.f32 %v1328, %v1432
    %v1434 = vpop.f32.mrf.mxu0
    %v1435 = vadd.f32 %v1330, %v1434
    %v1436 = vpop.f32.mrf.mxu0
    %v1437 = vpop.f32.mrf.mxu0
    %1438 = vdwg.mxu0
    %1439 = vmatprep.subr.bf16.mxu0 0
    %1440 = vmatpush1.bf16.msra.mxu0 0
    %1441 = vmatprep.subr.bf16.mxu0 0
    %1442 = vmatpush1.bf16.msra.mxu0 0
    %1443 = vmatprep.subr.bf16.mxu0 0
    %1444 = vmatpush1.bf16.msra.mxu0 0
    %1445 = vmatprep.subr.bf16.mxu0 0
    %1446 = vmatpush1.bf16.msra.mxu0 0
    %1447 = vmatprep.subr.bf16.mxu0 0
    %1448 = vmatpush1.bf16.msra.mxu0 0
    %1449 = vmatprep.subr.bf16.mxu0 0
    %1450 = vmatpush1.bf16.msra.mxu0 0
    %1451 = vmatprep.subr.bf16.mxu0 0
    %1452 = vmatpush1.bf16.msra.mxu0 0
    %1453 = vmatprep.subr.bf16.mxu0 %v1390
    %1454 = vmatpush1.bf16.msra.mxu0 %v1389
    %1455 = vmatprep.subr.bf16.mxu0 0
    %1456 = vmatpush2.bf16.msra.mxu0 0
    %1457 = vmatprep.subr.bf16.mxu0 0
    %1458 = vmatpush2.bf16.msra.mxu0 0
    %1459 = vmatprep.subr.bf16.mxu0 0
    %1460 = vmatpush2.bf16.msra.mxu0 0
    %1461 = vmatprep.subr.bf16.mxu0 0
    %1462 = vmatpush2.bf16.msra.mxu0 0
    %1463 = vmatprep.subr.bf16.mxu0 0
    %1464 = vmatpush2.bf16.msra.mxu0 0
    %1465 = vmatprep.subr.bf16.mxu0 0
    %1466 = vmatpush2.bf16.msra.mxu0 0
    %1467 = vmatprep.subr.bf16.mxu0 0
    %1468 = vmatpush2.bf16.msra.mxu0 0
    %1469 = vmatprep.subr.bf16.mxu0 0
    %1470 = vmatpush2.bf16.msra.mxu0 0
    %1471 = vmatprep.mubr.bf16.mxu0 0
    %1472 = vmatmul.mubr.bf16.gmra.mxu0 %v1396
    %v1473 = vpop.f32.mrf.mxu0
    %v1474 = vadd.f32 %v1369, %v1473
    %v1475 = vpop.f32.mrf.mxu0
    %v1476 = vadd.f32 %v1371, %v1475
    %v1477 = vpop.f32.mrf.mxu0
    %v1478 = vpop.f32.mrf.mxu0
    %1479 = vdwg.mxu0
    %v1480 = vld [vmem:[%s6 + $0x60] sm:$0xff]
    %v1481 = vld [vmem:[%s6 + $0x68] sm:$0xff]
    %v1482 = vpack.c.bf16 %v494, %v494
    %v1485 = vunpack.c.l.b16 %v1480
    %v1486 = vunpack.c.h.b16 %v1480
    %v1487 = vunpack.c.l.b16 %v1481
    %v1488 = vunpack.c.h.b16 %v1481
    %v1489 = vpack.c.b16 %v1485, %v1485
    %v1490 = vpack.c.b16 %v1486, %v1486
    %v1491 = vpack.c.b16 %v1487, %v1487
    %v1492 = vpack.c.b16 %v1488, %v1488
    %vm1493 = vcmask 64512
    %v1495 = vsel %vm1493, %v1482, 0
    %vm1497 = vcmask 1043456
    %v1499 = vsel %vm1497, %v1489, 0
    %v1502 = vsel %vm1497, %v1490, 0
    %v1505 = vsel %vm1497, %v1491, 0
    %v1508 = vsel %vm1497, %v1492, 0
    %1510 = vmatprep.subr.bf16.mxu0 0
    %1511 = vmatpush1.bf16.msra.mxu0 0
    %1512 = vmatprep.subr.bf16.mxu0 0
    %1513 = vmatpush1.bf16.msra.mxu0 0
    %1514 = vmatprep.subr.bf16.mxu0 0
    %1515 = vmatpush1.bf16.msra.mxu0 0
    %1516 = vmatprep.subr.bf16.mxu0 0
    %1517 = vmatpush1.bf16.msra.mxu0 0
    %1518 = vmatprep.subr.bf16.mxu0 0
    %1519 = vmatpush1.bf16.msra.mxu0 0
    %1520 = vmatprep.subr.bf16.mxu0 0
    %1521 = vmatpush1.bf16.msra.mxu0 0
    %1522 = vmatprep.subr.bf16.mxu0 0
    %1523 = vmatpush1.bf16.msra.mxu0 0
    %1524 = vmatprep.subr.bf16.mxu0 %v1502
    %1525 = vmatpush1.bf16.msra.mxu0 %v1499
    %1526 = vmatprep.subr.bf16.mxu0 0
    %1527 = vmatpush2.bf16.msra.mxu0 0
    %1528 = vmatprep.subr.bf16.mxu0 0
    %1529 = vmatpush2.bf16.msra.mxu0 0
    %1530 = vmatprep.subr.bf16.mxu0 0
    %1531 = vmatpush2.bf16.msra.mxu0 0
    %1532 = vmatprep.subr.bf16.mxu0 0
    %1533 = vmatpush2.bf16.msra.mxu0 0
    %1534 = vmatprep.subr.bf16.mxu0 0
    %1535 = vmatpush2.bf16.msra.mxu0 0
    %1536 = vmatprep.subr.bf16.mxu0 0
    %1537 = vmatpush2.bf16.msra.mxu0 0
    %1538 = vmatprep.subr.bf16.mxu0 0
    %1539 = vmatpush2.bf16.msra.mxu0 0
    %1540 = vmatprep.subr.bf16.mxu0 0
    %1541 = vmatpush2.bf16.msra.mxu0 0
    %1542 = vmatprep.mubr.bf16.mxu0 0
    %1543 = vmatmul.mubr.bf16.gmra.mxu0 %v1495
    %v1544 = vpop.f32.mrf.mxu0
    %v1545 = vadd.f32 0.0, %v1544
    %v1546 = vpop.f32.mrf.mxu0
    %v1547 = vadd.f32 0.0, %v1546
    %v1548 = vpop.f32.mrf.mxu0
    %v1549 = vpop.f32.mrf.mxu0
    %1550 = vdwg.mxu0
    %1551 = vmatprep.subr.bf16.mxu0 0
    %1552 = vmatpush1.bf16.msra.mxu0 0
    %1553 = vmatprep.subr.bf16.mxu0 0
    %1554 = vmatpush1.bf16.msra.mxu0 0
    %1555 = vmatprep.subr.bf16.mxu0 0
    %1556 = vmatpush1.bf16.msra.mxu0 0
    %1557 = vmatprep.subr.bf16.mxu0 0
    %1558 = vmatpush1.bf16.msra.mxu0 0
    %1559 = vmatprep.subr.bf16.mxu0 0
    %1560 = vmatpush1.bf16.msra.mxu0 0
    %1561 = vmatprep.subr.bf16.mxu0 0
    %1562 = vmatpush1.bf16.msra.mxu0 0
    %1563 = vmatprep.subr.bf16.mxu0 0
    %1564 = vmatpush1.bf16.msra.mxu0 0
    %1565 = vmatprep.subr.bf16.mxu0 %v1508
    %1566 = vmatpush1.bf16.msra.mxu0 %v1505
    %1567 = vmatprep.subr.bf16.mxu0 0
    %1568 = vmatpush2.bf16.msra.mxu0 0
    %1569 = vmatprep.subr.bf16.mxu0 0
    %1570 = vmatpush2.bf16.msra.mxu0 0
    %1571 = vmatprep.subr.bf16.mxu0 0
    %1572 = vmatpush2.bf16.msra.mxu0 0
    %1573 = vmatprep.subr.bf16.mxu0 0
    %1574 = vmatpush2.bf16.msra.mxu0 0
    %1575 = vmatprep.subr.bf16.mxu0 0
    %1576 = vmatpush2.bf16.msra.mxu0 0
    %1577 = vmatprep.subr.bf16.mxu0 0
    %1578 = vmatpush2.bf16.msra.mxu0 0
    %1579 = vmatprep.subr.bf16.mxu0 0
    %1580 = vmatpush2.bf16.msra.mxu0 0
    %1581 = vmatprep.subr.bf16.mxu0 0
    %1582 = vmatpush2.bf16.msra.mxu0 0
    %1583 = vmatprep.mubr.bf16.mxu0 0
    %1584 = vmatmul.mubr.bf16.gmra.mxu0 %v1495
    %v1585 = vpop.f32.mrf.mxu0
    %v1586 = vadd.f32 0.0, %v1585
    %v1587 = vpop.f32.mrf.mxu0
    %v1588 = vadd.f32 0.0, %v1587
    %v1589 = vpop.f32.mrf.mxu0
    %v1590 = vpop.f32.mrf.mxu0
    %1591 = vdwg.mxu0
    %v1592 = vadd.f32 %v1433, %v1545
    %v1593 = vadd.f32 %v1435, %v1547
    %v1594 = vadd.f32 %v1474, %v1586
    %v1595 = vadd.f32 %v1476, %v1588
    %v1596 = vld [vmem:[%s6 + $0x80] sm:$0xff]
    %v1597 = vld [vmem:[%s6 + $0x88] sm:$0xff]
    %v1598 = vld [vmem:[%s6 + $0x90] sm:$0xff]
    %v1599 = vld [vmem:[%s6 + $0x98] sm:$0xff]
    %v1600 = vld [vmem:[%s6 + $0xa0] sm:$0x33]
    %v1601 = vld [vmem:[%s6 + $0xa8] sm:$0x33]
    %v1602 = vpack.c.bf16 %v1234, %v1234
    %v1609 = vunpack.c.l.b16 %v1596
    %v1610 = vunpack.c.h.b16 %v1596
    %v1611 = vunpack.c.l.b16 %v1597
    %v1612 = vunpack.c.h.b16 %v1597
    %v1613 = vunpack.c.l.b16 %v1598
    %v1614 = vunpack.c.h.b16 %v1598
    %v1615 = vunpack.c.l.b16 %v1599
    %v1616 = vunpack.c.h.b16 %v1599
    %v1617 = vunpack.c.l.b16 %v1600
    %v1618 = vunpack.c.h.b16 %v1600
    %v1619 = vunpack.c.l.b16 %v1601
    %v1620 = vunpack.c.h.b16 %v1601
    %v1621 = vpack.c.b16 %v1613, %v1609
    %v1622 = vpack.c.b16 %v1614, %v1610
    %v1623 = vpack.c.b16 %v1615, %v1611
    %v1624 = vpack.c.b16 %v1616, %v1612
    %v1625 = vpack.c.b16 %v1617, %v1617
    %v1626 = vpack.c.b16 %v1618, %v1618
    %v1627 = vpack.c.b16 %v1619, %v1619
    %v1628 = vpack.c.b16 %v1620, %v1620
    %v1634 = vsel %vm942, %v1602, 0
    %v1637 = vsel %vm946, %v1625, 0
    %v1640 = vsel %vm946, %v1626, 0
    %v1643 = vsel %vm946, %v1627, 0
    %v1646 = vsel %vm946, %v1628, 0
    %1648 = vmatprep.subr.bf16.mxu0 0
    %1649 = vmatpush1.bf16.msra.mxu0 0
    %1650 = vmatprep.subr.bf16.mxu0 0
    %1651 = vmatpush1.bf16.msra.mxu0 0
    %1652 = vmatprep.subr.bf16.mxu0 0
    %1653 = vmatpush1.bf16.msra.mxu0 0
    %1654 = vmatprep.subr.bf16.mxu0 0
    %1655 = vmatpush1.bf16.msra.mxu0 0
    %1656 = vmatprep.subr.bf16.mxu0 0
    %1657 = vmatpush1.bf16.msra.mxu0 0
    %1658 = vmatprep.subr.bf16.mxu0 0
    %1659 = vmatpush1.bf16.msra.mxu0 0
    %1660 = vmatprep.subr.bf16.mxu0 %v1640
    %1661 = vmatpush1.bf16.msra.mxu0 %v1637
    %1662 = vmatprep.subr.bf16.mxu0 %v1622
    %1663 = vmatpush1.bf16.msra.mxu0 %v1621
    %1664 = vmatprep.subr.bf16.mxu0 0
    %1665 = vmatpush2.bf16.msra.mxu0 0
    %1666 = vmatprep.subr.bf16.mxu0 0
    %1667 = vmatpush2.bf16.msra.mxu0 0
    %1668 = vmatprep.subr.bf16.mxu0 0
    %1669 = vmatpush2.bf16.msra.mxu0 0
    %1670 = vmatprep.subr.bf16.mxu0 0
    %1671 = vmatpush2.bf16.msra.mxu0 0
    %1672 = vmatprep.subr.bf16.mxu0 0
    %1673 = vmatpush2.bf16.msra.mxu0 0
    %1674 = vmatprep.subr.bf16.mxu0 0
    %1675 = vmatpush2.bf16.msra.mxu0 0
    %1676 = vmatprep.subr.bf16.mxu0 0
    %1677 = vmatpush2.bf16.msra.mxu0 0
    %1678 = vmatprep.subr.bf16.mxu0 0
    %1679 = vmatpush2.bf16.msra.mxu0 0
    %1680 = vmatprep.mubr.bf16.mxu0 0
    %1681 = vmatmul.mubr.bf16.gmra.mxu0 %v1634
    %v1682 = vpop.f32.mrf.mxu0
    %v1683 = vadd.f32 0.0, %v1682
    %v1684 = vpop.f32.mrf.mxu0
    %v1685 = vadd.f32 0.0, %v1684
    %v1686 = vpop.f32.mrf.mxu0
    %v1687 = vpop.f32.mrf.mxu0
    %1688 = vdwg.mxu0
    %1689 = vmatprep.subr.bf16.mxu0 0
    %1690 = vmatpush1.bf16.msra.mxu0 0
    %1691 = vmatprep.subr.bf16.mxu0 0
    %1692 = vmatpush1.bf16.msra.mxu0 0
    %1693 = vmatprep.subr.bf16.mxu0 0
    %1694 = vmatpush1.bf16.msra.mxu0 0
    %1695 = vmatprep.subr.bf16.mxu0 0
    %1696 = vmatpush1.bf16.msra.mxu0 0
    %1697 = vmatprep.subr.bf16.mxu0 0
    %1698 = vmatpush1.bf16.msra.mxu0 0
    %1699 = vmatprep.subr.bf16.mxu0 0
    %1700 = vmatpush1.bf16.msra.mxu0 0
    %1701 = vmatprep.subr.bf16.mxu0 %v1646
    %1702 = vmatpush1.bf16.msra.mxu0 %v1643
    %1703 = vmatprep.subr.bf16.mxu0 %v1624
    %1704 = vmatpush1.bf16.msra.mxu0 %v1623
    %1705 = vmatprep.subr.bf16.mxu0 0
    %1706 = vmatpush2.bf16.msra.mxu0 0
    %1707 = vmatprep.subr.bf16.mxu0 0
    %1708 = vmatpush2.bf16.msra.mxu0 0
    %1709 = vmatprep.subr.bf16.mxu0 0
    %1710 = vmatpush2.bf16.msra.mxu0 0
    %1711 = vmatprep.subr.bf16.mxu0 0
    %1712 = vmatpush2.bf16.msra.mxu0 0
    %1713 = vmatprep.subr.bf16.mxu0 0
    %1714 = vmatpush2.bf16.msra.mxu0 0
    %1715 = vmatprep.subr.bf16.mxu0 0
    %1716 = vmatpush2.bf16.msra.mxu0 0
    %1717 = vmatprep.subr.bf16.mxu0 0
    %1718 = vmatpush2.bf16.msra.mxu0 0
    %1719 = vmatprep.subr.bf16.mxu0 0
    %1720 = vmatpush2.bf16.msra.mxu0 0
    %1721 = vmatprep.mubr.bf16.mxu0 0
    %1722 = vmatmul.mubr.bf16.gmra.mxu0 %v1634
    %v1723 = vpop.f32.mrf.mxu0
    %v1724 = vadd.f32 0.0, %v1723
    %v1725 = vpop.f32.mrf.mxu0
    %v1726 = vadd.f32 0.0, %v1725
    %v1727 = vpop.f32.mrf.mxu0
    %v1728 = vpop.f32.mrf.mxu0
    %1729 = vdwg.mxu0
    %v1730 = vadd.f32 %v1592, %v1683
    %v1731 = vadd.f32 %v1593, %v1685
    %v1732 = vadd.f32 %v1594, %v1724
    %v1733 = vadd.f32 %v1595, %v1726
    %v1734 = vld [vmem:[%s6 + $0xa0] sm:$0x44]
    %v1735 = vld [vmem:[%s6 + $0xa8] sm:$0x44]
    %v1736 = vunpack.c.l.bf16 %v1734
    %v1737 = vunpack.c.h.bf16 %v1734
    %v1738 = vunpack.c.l.bf16 %v1735
    %v1739 = vunpack.c.h.bf16 %v1735
    %v1744 = vrot.slane %v1736, 4
    %v1745 = vrot.slane %v1737, 4
    %v1746 = vrot.slane %v1738, 4
    %v1747 = vrot.slane %v1739, 4
    %v1752 = vadd.f32 %v1730, %v1744
    %v1753 = vadd.f32 %v1731, %v1745
    %v1754 = vadd.f32 %v1732, %v1746
    %v1755 = vadd.f32 %v1733, %v1747
    %vm1756 = vcmp.gt.f32.partialorder %v1752, 0.0
    %vm1757 = vcmp.gt.f32.partialorder %v1753, 0.0
    %vm1758 = vcmp.gt.f32.partialorder %v1754, 0.0
    %vm1759 = vcmp.gt.f32.partialorder %v1755, 0.0
    %v1760 = vmul.f32 %v1752, 1.442695
    %v1761 = vpow.pop %v1760
    %v1762 = vmul.f32 %v1753, 1.442695
    %v1763 = vpow.pop %v1762
    %v1764 = vmul.f32 %v1754, 1.442695
    %v1765 = vpow.pop %v1764
    %v1766 = vmul.f32 %v1755, 1.442695
    %v1767 = vpow.pop %v1766
    %v1768 = vsub.f32 %v1761, 1.0
    %v1769 = vsub.f32 %v1763, 1.0
    %v1770 = vsub.f32 %v1765, 1.0
    %v1771 = vsub.f32 %v1767, 1.0
    %v1772 = vsel %vm1756, %v1752, %v1768
    %v1773 = vsel %vm1757, %v1753, %v1769
    %v1774 = vsel %vm1758, %v1754, %v1770
    %v1775 = vsel %vm1759, %v1755, %v1771
    %v1776 = vld [vmem:[#allocation2] sm:$0xff]
    %v1777 = vld [vmem:[#allocation2 + $0x8] sm:$0xff]
    %v1778 = vld [vmem:[#allocation2 + $0x10] sm:$0xff]
    %v1779 = vld [vmem:[#allocation2 + $0x18] sm:$0xff]
    %v1780 = vld [vmem:[#allocation2 + $0x20] sm:$0xff]
    %v1781 = vld [vmem:[#allocation2 + $0x28] sm:$0xff]
    %v1782 = vld [vmem:[#allocation2 + $0x30] sm:$0xff]
    %v1783 = vld [vmem:[#allocation2 + $0x38] sm:$0xff]
    %v1784 = vld [vmem:[#allocation2 + $0x40] sm:$0xff]
    %v1785 = vld [vmem:[#allocation2 + $0x48] sm:$0xff]
    %v1786 = vld [vmem:[#allocation2 + $0x50] sm:$0xff]
    %v1787 = vld [vmem:[#allocation2 + $0x58] sm:$0xff]
    %v1788 = vld [vmem:[#allocation2 + $0x60] sm:$0xff]
    %v1789 = vld [vmem:[#allocation2 + $0x68] sm:$0xff]
    %v1790 = vld [vmem:[#allocation2 + $0x70] sm:$0xff]
    %v1791 = vld [vmem:[#allocation2 + $0x78] sm:$0xff]
    %v1792 = vld [vmem:[#allocation2 + $0x80] sm:$0xff]
    %v1793 = vld [vmem:[#allocation2 + $0x88] sm:$0xff]
    %v1794 = vld [vmem:[#allocation2 + $0x90] sm:$0xff]
    %v1795 = vld [vmem:[#allocation2 + $0x98] sm:$0xff]
    %v1796 = vld [vmem:[#allocation2 + $0xa0] sm:$0xff]
    %v1797 = vld [vmem:[#allocation2 + $0xa8] sm:$0xff]
    %v1798 = vld [vmem:[#allocation2 + $0xb0] sm:$0xff]
    %v1799 = vld [vmem:[#allocation2 + $0xb8] sm:$0xff]
    %v1800 = vld [vmem:[#allocation2 + $0xc0] sm:$0xff]
    %v1801 = vld [vmem:[#allocation2 + $0xc8] sm:$0xff]
    %v1802 = vld [vmem:[#allocation2 + $0xd0] sm:$0xff]
    %v1803 = vld [vmem:[#allocation2 + $0xd8] sm:$0xff]
    %v1804 = vld [vmem:[#allocation2 + $0xe0] sm:$0xff]
    %v1805 = vld [vmem:[#allocation2 + $0xe8] sm:$0xff]
    %v1806 = vld [vmem:[#allocation2 + $0xf0] sm:$0xff]
    %v1807 = vld [vmem:[#allocation2 + $0xf8] sm:$0xff]
    %v1808 = vld [vmem:[#allocation2 + $0x100] sm:$0xff]
    %v1809 = vld [vmem:[#allocation2 + $0x108] sm:$0xff]
    %v1810 = vld [vmem:[#allocation2 + $0x110] sm:$0xff]
    %v1811 = vld [vmem:[#allocation2 + $0x118] sm:$0xff]
    %v1812 = vld [vmem:[#allocation2 + $0x120] sm:$0xff]
    %v1813 = vld [vmem:[#allocation2 + $0x128] sm:$0xff]
    %v1814 = vld [vmem:[#allocation2 + $0x130] sm:$0xff]
    %v1815 = vld [vmem:[#allocation2 + $0x138] sm:$0xff]
    %v1816 = vld [vmem:[#allocation2 + $0x140] sm:$0xff]
    %v1817 = vld [vmem:[#allocation2 + $0x148] sm:$0xff]
    %v1818 = vld [vmem:[#allocation2 + $0x150] sm:$0xff]
    %v1819 = vld [vmem:[#allocation2 + $0x158] sm:$0xff]
    %v1820 = vld [vmem:[#allocation2 + $0x160] sm:$0xff]
    %v1821 = vld [vmem:[#allocation2 + $0x168] sm:$0xff]
    %v1822 = vld [vmem:[#allocation2 + $0x170] sm:$0xff]
    %v1823 = vld [vmem:[#allocation2 + $0x178] sm:$0xff]
    %v1824 = vld [vmem:[#allocation2 + $0x180] sm:$0xff]
    %v1825 = vld [vmem:[#allocation2 + $0x188] sm:$0xff]
    %v1826 = vld [vmem:[#allocation2 + $0x190] sm:$0xff]
    %v1827 = vld [vmem:[#allocation2 + $0x198] sm:$0xff]
    %v1828 = vld [vmem:[#allocation2 + $0x1a0] sm:$0xff]
    %v1829 = vld [vmem:[#allocation2 + $0x1a8] sm:$0xff]
    %v1830 = vld [vmem:[#allocation2 + $0x1b0] sm:$0xff]
    %v1831 = vld [vmem:[#allocation2 + $0x1b8] sm:$0xff]
    %v1832 = vld [vmem:[#allocation2 + $0x1c0] sm:$0xff]
    %v1833 = vld [vmem:[#allocation2 + $0x1c8] sm:$0xff]
    %v1834 = vld [vmem:[#allocation2 + $0x1d0] sm:$0xff]
    %v1835 = vld [vmem:[#allocation2 + $0x1d8] sm:$0xff]
    %v1836 = vld [vmem:[#allocation2 + $0x1e0] sm:$0xff]
    %v1837 = vld [vmem:[#allocation2 + $0x1e8] sm:$0xff]
    %v1838 = vld [vmem:[#allocation2 + $0x1f0] sm:$0xff]
    %v1839 = vld [vmem:[#allocation2 + $0x1f8] sm:$0xff]
    %v1840 = vpack.c.bf16 %v1772, %v1772
    %v1841 = vpack.c.bf16 %v1773, %v1773
    %v1842 = vpack.c.bf16 %v1774, %v1774
    %v1843 = vpack.c.bf16 %v1775, %v1775
    %v1844 = vld [vmem:[#allocation2 + $0x200] sm:$0x11]
    %v1845 = vunpack.c.l.bf16 %v1844
    %v1846 = vunpack.c.h.bf16 %v1844
    %v1911 = vunpack.c.l.b16 %v1776
    %v1912 = vunpack.c.h.b16 %v1776
    %v1913 = vunpack.c.l.b16 %v1777
    %v1914 = vunpack.c.h.b16 %v1777
    %v1915 = vunpack.c.l.b16 %v1778
    %v1916 = vunpack.c.h.b16 %v1778
    %v1917 = vunpack.c.l.b16 %v1779
    %v1918 = vunpack.c.h.b16 %v1779
    %v1919 = vunpack.c.l.b16 %v1780
    %v1920 = vunpack.c.h.b16 %v1780
    %v1921 = vunpack.c.l.b16 %v1781
    %v1922 = vunpack.c.h.b16 %v1781
    %v1923 = vunpack.c.l.b16 %v1782
    %v1924 = vunpack.c.h.b16 %v1782
    %v1925 = vunpack.c.l.b16 %v1783
    %v1926 = vunpack.c.h.b16 %v1783
    %v1927 = vunpack.c.l.b16 %v1784
    %v1928 = vunpack.c.h.b16 %v1784
    %v1929 = vunpack.c.l.b16 %v1785
    %v1930 = vunpack.c.h.b16 %v1785
    %v1931 = vunpack.c.l.b16 %v1786
    %v1932 = vunpack.c.h.b16 %v1786
    %v1933 = vunpack.c.l.b16 %v1787
    %v1934 = vunpack.c.h.b16 %v1787
    %v1935 = vunpack.c.l.b16 %v1788
    %v1936 = vunpack.c.h.b16 %v1788
    %v1937 = vunpack.c.l.b16 %v1789
    %v1938 = vunpack.c.h.b16 %v1789
    %v1939 = vunpack.c.l.b16 %v1790
    %v1940 = vunpack.c.h.b16 %v1790
    %v1941 = vunpack.c.l.b16 %v1791
    %v1942 = vunpack.c.h.b16 %v1791
    %v1943 = vunpack.c.l.b16 %v1792
    %v1944 = vunpack.c.h.b16 %v1792
    %v1945 = vunpack.c.l.b16 %v1793
    %v1946 = vunpack.c.h.b16 %v1793
    %v1947 = vunpack.c.l.b16 %v1794
    %v1948 = vunpack.c.h.b16 %v1794
    %v1949 = vunpack.c.l.b16 %v1795
    %v1950 = vunpack.c.h.b16 %v1795
    %v1951 = vunpack.c.l.b16 %v1796
    %v1952 = vunpack.c.h.b16 %v1796
    %v1953 = vunpack.c.l.b16 %v1797
    %v1954 = vunpack.c.h.b16 %v1797
    %v1955 = vunpack.c.l.b16 %v1798
    %v1956 = vunpack.c.h.b16 %v1798
    %v1957 = vunpack.c.l.b16 %v1799
    %v1958 = vunpack.c.h.b16 %v1799
    %v1959 = vunpack.c.l.b16 %v1800
    %v1960 = vunpack.c.h.b16 %v1800
    %v1961 = vunpack.c.l.b16 %v1801
    %v1962 = vunpack.c.h.b16 %v1801
    %v1963 = vunpack.c.l.b16 %v1802
    %v1964 = vunpack.c.h.b16 %v1802
    %v1965 = vunpack.c.l.b16 %v1803
    %v1966 = vunpack.c.h.b16 %v1803
    %v1967 = vunpack.c.l.b16 %v1804
    %v1968 = vunpack.c.h.b16 %v1804
    %v1969 = vunpack.c.l.b16 %v1805
    %v1970 = vunpack.c.h.b16 %v1805
    %v1971 = vunpack.c.l.b16 %v1806
    %v1972 = vunpack.c.h.b16 %v1806
    %v1973 = vunpack.c.l.b16 %v1807
    %v1974 = vunpack.c.h.b16 %v1807
    %v1975 = vunpack.c.l.b16 %v1808
    %v1976 = vunpack.c.h.b16 %v1808
    %v1977 = vunpack.c.l.b16 %v1809
    %v1978 = vunpack.c.h.b16 %v1809
    %v1979 = vunpack.c.l.b16 %v1810
    %v1980 = vunpack.c.h.b16 %v1810
    %v1981 = vunpack.c.l.b16 %v1811
    %v1982 = vunpack.c.h.b16 %v1811
    %v1983 = vunpack.c.l.b16 %v1812
    %v1984 = vunpack.c.h.b16 %v1812
    %v1985 = vunpack.c.l.b16 %v1813
    %v1986 = vunpack.c.h.b16 %v1813
    %v1987 = vunpack.c.l.b16 %v1814
    %v1988 = vunpack.c.h.b16 %v1814
    %v1989 = vunpack.c.l.b16 %v1815
    %v1990 = vunpack.c.h.b16 %v1815
    %v1991 = vunpack.c.l.b16 %v1816
    %v1992 = vunpack.c.h.b16 %v1816
    %v1993 = vunpack.c.l.b16 %v1817
    %v1994 = vunpack.c.h.b16 %v1817
    %v1995 = vunpack.c.l.b16 %v1818
    %v1996 = vunpack.c.h.b16 %v1818
    %v1997 = vunpack.c.l.b16 %v1819
    %v1998 = vunpack.c.h.b16 %v1819
    %v1999 = vunpack.c.l.b16 %v1820
    %v2000 = vunpack.c.h.b16 %v1820
    %v2001 = vunpack.c.l.b16 %v1821
    %v2002 = vunpack.c.h.b16 %v1821
    %v2003 = vunpack.c.l.b16 %v1822
    %v2004 = vunpack.c.h.b16 %v1822
    %v2005 = vunpack.c.l.b16 %v1823
    %v2006 = vunpack.c.h.b16 %v1823
    %v2007 = vunpack.c.l.b16 %v1824
    %v2008 = vunpack.c.h.b16 %v1824
    %v2009 = vunpack.c.l.b16 %v1825
    %v2010 = vunpack.c.h.b16 %v1825
    %v2011 = vunpack.c.l.b16 %v1826
    %v2012 = vunpack.c.h.b16 %v1826
    %v2013 = vunpack.c.l.b16 %v1827
    %v2014 = vunpack.c.h.b16 %v1827
    %v2015 = vunpack.c.l.b16 %v1828
    %v2016 = vunpack.c.h.b16 %v1828
    %v2017 = vunpack.c.l.b16 %v1829
    %v2018 = vunpack.c.h.b16 %v1829
    %v2019 = vunpack.c.l.b16 %v1830
    %v2020 = vunpack.c.h.b16 %v1830
    %v2021 = vunpack.c.l.b16 %v1831
    %v2022 = vunpack.c.h.b16 %v1831
    %v2023 = vunpack.c.l.b16 %v1832
    %v2024 = vunpack.c.h.b16 %v1832
    %v2025 = vunpack.c.l.b16 %v1833
    %v2026 = vunpack.c.h.b16 %v1833
    %v2027 = vunpack.c.l.b16 %v1834
    %v2028 = vunpack.c.h.b16 %v1834
    %v2029 = vunpack.c.l.b16 %v1835
    %v2030 = vunpack.c.h.b16 %v1835
    %v2031 = vunpack.c.l.b16 %v1836
    %v2032 = vunpack.c.h.b16 %v1836
    %v2033 = vunpack.c.l.b16 %v1837
    %v2034 = vunpack.c.h.b16 %v1837
    %v2035 = vunpack.c.l.b16 %v1838
    %v2036 = vunpack.c.h.b16 %v1838
    %v2037 = vunpack.c.l.b16 %v1839
    %v2038 = vunpack.c.h.b16 %v1839
    %v2039 = vpack.c.b16 %v1913, %v1911
    %v2040 = vpack.c.b16 %v1914, %v1912
    %v2041 = vpack.c.b16 %v1917, %v1915
    %v2042 = vpack.c.b16 %v1918, %v1916
    %v2043 = vpack.c.b16 %v1921, %v1919
    %v2044 = vpack.c.b16 %v1922, %v1920
    %v2045 = vpack.c.b16 %v1925, %v1923
    %v2046 = vpack.c.b16 %v1926, %v1924
    %v2047 = vpack.c.b16 %v1929, %v1927
    %v2048 = vpack.c.b16 %v1930, %v1928
    %v2049 = vpack.c.b16 %v1933, %v1931
    %v2050 = vpack.c.b16 %v1934, %v1932
    %v2051 = vpack.c.b16 %v1937, %v1935
    %v2052 = vpack.c.b16 %v1938, %v1936
    %v2053 = vpack.c.b16 %v1941, %v1939
    %v2054 = vpack.c.b16 %v1942, %v1940
    %v2055 = vpack.c.b16 %v1945, %v1943
    %v2056 = vpack.c.b16 %v1946, %v1944
    %v2057 = vpack.c.b16 %v1949, %v1947
    %v2058 = vpack.c.b16 %v1950, %v1948
    %v2059 = vpack.c.b16 %v1953, %v1951
    %v2060 = vpack.c.b16 %v1954, %v1952
    %v2061 = vpack.c.b16 %v1957, %v1955
    %v2062 = vpack.c.b16 %v1958, %v1956
    %v2063 = vpack.c.b16 %v1961, %v1959
    %v2064 = vpack.c.b16 %v1962, %v1960
    %v2065 = vpack.c.b16 %v1965, %v1963
    %v2066 = vpack.c.b16 %v1966, %v1964
    %v2067 = vpack.c.b16 %v1969, %v1967
    %v2068 = vpack.c.b16 %v1970, %v1968
    %v2069 = vpack.c.b16 %v1973, %v1971
    %v2070 = vpack.c.b16 %v1974, %v1972
    %v2071 = vpack.c.b16 %v1977, %v1975
    %v2072 = vpack.c.b16 %v1978, %v1976
    %v2073 = vpack.c.b16 %v1981, %v1979
    %v2074 = vpack.c.b16 %v1982, %v1980
    %v2075 = vpack.c.b16 %v1985, %v1983
    %v2076 = vpack.c.b16 %v1986, %v1984
    %v2077 = vpack.c.b16 %v1989, %v1987
    %v2078 = vpack.c.b16 %v1990, %v1988
    %v2079 = vpack.c.b16 %v1993, %v1991
    %v2080 = vpack.c.b16 %v1994, %v1992
    %v2081 = vpack.c.b16 %v1997, %v1995
    %v2082 = vpack.c.b16 %v1998, %v1996
    %v2083 = vpack.c.b16 %v2001, %v1999
    %v2084 = vpack.c.b16 %v2002, %v2000
    %v2085 = vpack.c.b16 %v2005, %v2003
    %v2086 = vpack.c.b16 %v2006, %v2004
    %v2087 = vpack.c.b16 %v2009, %v2007
    %v2088 = vpack.c.b16 %v2010, %v2008
    %v2089 = vpack.c.b16 %v2013, %v2011
    %v2090 = vpack.c.b16 %v2014, %v2012
    %v2091 = vpack.c.b16 %v2017, %v2015
    %v2092 = vpack.c.b16 %v2018, %v2016
    %v2093 = vpack.c.b16 %v2021, %v2019
    %v2094 = vpack.c.b16 %v2022, %v2020
    %v2095 = vpack.c.b16 %v2025, %v2023
    %v2096 = vpack.c.b16 %v2026, %v2024
    %v2097 = vpack.c.b16 %v2029, %v2027
    %v2098 = vpack.c.b16 %v2030, %v2028
    %v2099 = vpack.c.b16 %v2033, %v2031
    %v2100 = vpack.c.b16 %v2034, %v2032
    %v2101 = vpack.c.b16 %v2037, %v2035
    %v2102 = vpack.c.b16 %v2038, %v2036
    %2167 = vmatprep.subr.bf16.mxu0 %v2054
    %2168 = vmatpush1.bf16.msra.mxu0 %v2053
    %2169 = vmatprep.subr.bf16.mxu0 %v2052
    %2170 = vmatpush1.bf16.msra.mxu0 %v2051
    %2171 = vmatprep.subr.bf16.mxu0 %v2050
    %2172 = vmatpush1.bf16.msra.mxu0 %v2049
    %2173 = vmatprep.subr.bf16.mxu0 %v2048
    %2174 = vmatpush1.bf16.msra.mxu0 %v2047
    %2175 = vmatprep.subr.bf16.mxu0 %v2046
    %2176 = vmatpush1.bf16.msra.mxu0 %v2045
    %2177 = vmatprep.subr.bf16.mxu0 %v2044
    %2178 = vmatpush1.bf16.msra.mxu0 %v2043
    %2179 = vmatprep.subr.bf16.mxu0 %v2042
    %2180 = vmatpush1.bf16.msra.mxu0 %v2041
    %2181 = vmatprep.subr.bf16.mxu0 %v2040
    %2182 = vmatpush1.bf16.msra.mxu0 %v2039
    %2183 = vmatprep.subr.bf16.mxu0 %v2070
    %2184 = vmatpush2.bf16.msra.mxu0 %v2069
    %2185 = vmatprep.subr.bf16.mxu0 %v2068
    %2186 = vmatpush2.bf16.msra.mxu0 %v2067
    %2187 = vmatprep.subr.bf16.mxu0 %v2066
    %2188 = vmatpush2.bf16.msra.mxu0 %v2065
    %2189 = vmatprep.subr.bf16.mxu0 %v2064
    %2190 = vmatpush2.bf16.msra.mxu0 %v2063
    %2191 = vmatprep.subr.bf16.mxu0 %v2062
    %2192 = vmatpush2.bf16.msra.mxu0 %v2061
    %2193 = vmatprep.subr.bf16.mxu0 %v2060
    %2194 = vmatpush2.bf16.msra.mxu0 %v2059
    %2195 = vmatprep.subr.bf16.mxu0 %v2058
    %2196 = vmatpush2.bf16.msra.mxu0 %v2057
    %2197 = vmatprep.subr.bf16.mxu0 %v2056
    %2198 = vmatpush2.bf16.msra.mxu0 %v2055
    %2199 = vmatprep.mubr.bf16.mxu0 %v1841
    %2200 = vmatmul.mubr.bf16.gmra.mxu0 %v1840
    %v2201 = vpop.f32.mrf.mxu0
    %v2202 = vadd.f32 %v1845, %v2201
    %v2203 = vpop.f32.mrf.mxu0
    %v2204 = vadd.f32 %v1846, %v2203
    %v2205 = vpop.f32.mrf.mxu0
    %v2206 = vpop.f32.mrf.mxu0
    %2207 = vdwg.mxu0
    %2208 = vmatprep.subr.bf16.mxu0 %v2086
    %2209 = vmatpush1.bf16.msra.mxu0 %v2085
    %2210 = vmatprep.subr.bf16.mxu0 %v2084
    %2211 = vmatpush1.bf16.msra.mxu0 %v2083
    %2212 = vmatprep.subr.bf16.mxu0 %v2082
    %2213 = vmatpush1.bf16.msra.mxu0 %v2081
    %2214 = vmatprep.subr.bf16.mxu0 %v2080
    %2215 = vmatpush1.bf16.msra.mxu0 %v2079
    %2216 = vmatprep.subr.bf16.mxu0 %v2078
    %2217 = vmatpush1.bf16.msra.mxu0 %v2077
    %2218 = vmatprep.subr.bf16.mxu0 %v2076
    %2219 = vmatpush1.bf16.msra.mxu0 %v2075
    %2220 = vmatprep.subr.bf16.mxu0 %v2074
    %2221 = vmatpush1.bf16.msra.mxu0 %v2073
    %2222 = vmatprep.subr.bf16.mxu0 %v2072
    %2223 = vmatpush1.bf16.msra.mxu0 %v2071
    %2224 = vmatprep.subr.bf16.mxu0 %v2102
    %2225 = vmatpush2.bf16.msra.mxu0 %v2101
    %2226 = vmatprep.subr.bf16.mxu0 %v2100
    %2227 = vmatpush2.bf16.msra.mxu0 %v2099
    %2228 = vmatprep.subr.bf16.mxu0 %v2098
    %2229 = vmatpush2.bf16.msra.mxu0 %v2097
    %2230 = vmatprep.subr.bf16.mxu0 %v2096
    %2231 = vmatpush2.bf16.msra.mxu0 %v2095
    %2232 = vmatprep.subr.bf16.mxu0 %v2094
    %2233 = vmatpush2.bf16.msra.mxu0 %v2093
    %2234 = vmatprep.subr.bf16.mxu0 %v2092
    %2235 = vmatpush2.bf16.msra.mxu0 %v2091
    %2236 = vmatprep.subr.bf16.mxu0 %v2090
    %2237 = vmatpush2.bf16.msra.mxu0 %v2089
    %2238 = vmatprep.subr.bf16.mxu0 %v2088
    %2239 = vmatpush2.bf16.msra.mxu0 %v2087
    %2240 = vmatprep.mubr.bf16.mxu0 %v1843
    %2241 = vmatmul.mubr.bf16.gmra.mxu0 %v1842
    %v2242 = vpop.f32.mrf.mxu0
    %v2243 = vadd.f32 %v2202, %v2242
    %v2244 = vpop.f32.mrf.mxu0
    %v2245 = vadd.f32 %v2204, %v2244
    %v2246 = vpop.f32.mrf.mxu0
    %v2247 = vpop.f32.mrf.mxu0
    %2248 = vdwg.mxu0
    %vm2249 = vcmp.gt.f32.partialorder %v2243, 0.0
    %vm2250 = vcmp.gt.f32.partialorder %v2245, 0.0
    %v2251 = vmul.f32 %v2243, 1.442695
    %v2252 = vpow.pop %v2251
    %v2253 = vmul.f32 %v2245, 1.442695
    %v2254 = vpow.pop %v2253
    %v2255 = vsub.f32 %v2252, 1.0
    %v2256 = vsub.f32 %v2254, 1.0
    %v2257 = vsel %vm2249, %v2243, %v2255
    %v2258 = vsel %vm2250, %v2245, %v2256
    %v2259 = vld [vmem:[%s4 + $0x50] sm:$0xf]
    %v2260 = vld [vmem:[%s4 + $0x54] sm:$0xf]
    %v2261 = vld [vmem:[%s4 + $0x58] sm:$0xf]
    %v2262 = vld [vmem:[%s4 + $0x5c] sm:$0xf]
    %v2263 = vld [vmem:[%s4 + $0x60] sm:$0xf]
    %v2264 = vld [vmem:[%s4 + $0x64] sm:$0xf]
    %v2265 = vld [vmem:[%s4 + $0x68] sm:$0xf]
    %v2266 = vld [vmem:[%s4 + $0x6c] sm:$0xf]
    %v2267 = vld [vmem:[%s4 + $0x70] sm:$0xf]
    %v2268 = vld [vmem:[%s4 + $0x74] sm:$0xf]
    %v2269 = vld [vmem:[%s4 + $0x78] sm:$0xf]
    %v2270 = vld [vmem:[%s4 + $0x7c] sm:$0xf]
    %v2271 = vld [vmem:[%s4 + $0x80] sm:$0xf]
    %v2272 = vld [vmem:[%s4 + $0x84] sm:$0xf]
    %v2273 = vld [vmem:[%s4 + $0x88] sm:$0xf]
    %v2274 = vld [vmem:[%s4 + $0x8c] sm:$0xf]
    %v2275 = vld [vmem:[%s4 + $0x90] sm:$0xf]
    %v2276 = vld [vmem:[%s4 + $0x94] sm:$0xf]
    %v2277 = vld [vmem:[%s4 + $0x98] sm:$0xf]
    %v2278 = vld [vmem:[%s4 + $0x9c] sm:$0xf]
    %v2279 = vld [vmem:[%s4 + $0xa0] sm:$0xf]
    %v2280 = vld [vmem:[%s4 + $0xa4] sm:$0xf]
    %v2281 = vld [vmem:[%s4 + $0xa8] sm:$0xf]
    %v2282 = vld [vmem:[%s4 + $0xac] sm:$0xf]
    %v2283 = vld [vmem:[%s4 + $0xb0] sm:$0xf]
    %v2284 = vld [vmem:[%s4 + $0xb4] sm:$0xf]
    %v2285 = vld [vmem:[%s4 + $0xb8] sm:$0xf]
    %v2286 = vld [vmem:[%s4 + $0xbc] sm:$0xf]
    %v2287 = vld [vmem:[%s4 + $0xc0] sm:$0xf]
    %v2288 = vld [vmem:[%s4 + $0xc4] sm:$0xf]
    %v2289 = vld [vmem:[%s4 + $0xc8] sm:$0xf]
    %v2290 = vld [vmem:[%s4 + $0xcc] sm:$0xf]
    %v2291 = vpack.c.bf16 %v2257, %v2257
    %v2292 = vpack.c.bf16 %v2258, %v2258
    %v2293 = vld [vmem:[%s4 + $0xd0] sm:$0x2]
    %v2294 = vunpack.c.l.bf16 %v2293
    %v2327 = vunpack.c.l.b16 %v2259
    %v2328 = vunpack.c.l.b16 %v2260
    %v2329 = vunpack.c.l.b16 %v2261
    %v2330 = vunpack.c.l.b16 %v2262
    %v2331 = vunpack.c.l.b16 %v2263
    %v2332 = vunpack.c.l.b16 %v2264
    %v2333 = vunpack.c.l.b16 %v2265
    %v2334 = vunpack.c.l.b16 %v2266
    %v2335 = vunpack.c.l.b16 %v2267
    %v2336 = vunpack.c.l.b16 %v2268
    %v2337 = vunpack.c.l.b16 %v2269
    %v2338 = vunpack.c.l.b16 %v2270
    %v2339 = vunpack.c.l.b16 %v2271
    %v2340 = vunpack.c.l.b16 %v2272
    %v2341 = vunpack.c.l.b16 %v2273
    %v2342 = vunpack.c.l.b16 %v2274
    %v2343 = vunpack.c.l.b16 %v2275
    %v2344 = vunpack.c.l.b16 %v2276
    %v2345 = vunpack.c.l.b16 %v2277
    %v2346 = vunpack.c.l.b16 %v2278
    %v2347 = vunpack.c.l.b16 %v2279
    %v2348 = vunpack.c.l.b16 %v2280
    %v2349 = vunpack.c.l.b16 %v2281
    %v2350 = vunpack.c.l.b16 %v2282
    %v2351 = vunpack.c.l.b16 %v2283
    %v2352 = vunpack.c.l.b16 %v2284
    %v2353 = vunpack.c.l.b16 %v2285
    %v2354 = vunpack.c.l.b16 %v2286
    %v2355 = vunpack.c.l.b16 %v2287
    %v2356 = vunpack.c.l.b16 %v2288
    %v2357 = vunpack.c.l.b16 %v2289
    %v2358 = vunpack.c.l.b16 %v2290
    %v2359 = vpack.c.b16 %v2328, %v2327
    %v2360 = vpack.c.b16 %v2330, %v2329
    %v2361 = vpack.c.b16 %v2332, %v2331
    %v2362 = vpack.c.b16 %v2334, %v2333
    %v2363 = vpack.c.b16 %v2336, %v2335
    %v2364 = vpack.c.b16 %v2338, %v2337
    %v2365 = vpack.c.b16 %v2340, %v2339
    %v2366 = vpack.c.b16 %v2342, %v2341
    %v2367 = vpack.c.b16 %v2344, %v2343
    %v2368 = vpack.c.b16 %v2346, %v2345
    %v2369 = vpack.c.b16 %v2348, %v2347
    %v2370 = vpack.c.b16 %v2350, %v2349
    %v2371 = vpack.c.b16 %v2352, %v2351
    %v2372 = vpack.c.b16 %v2354, %v2353
    %v2373 = vpack.c.b16 %v2356, %v2355
    %v2374 = vpack.c.b16 %v2358, %v2357
    %v2392 = vrot.slane %v2294, 2
    %2394 = vmatprep.subr.bf16.mxu0 0
    %2395 = vmatpush1.bf16.msra.mxu0 %v2366
    %2396 = vmatprep.subr.bf16.mxu0 0
    %2397 = vmatpush1.bf16.msra.mxu0 %v2365
    %2398 = vmatprep.subr.bf16.mxu0 0
    %2399 = vmatpush1.bf16.msra.mxu0 %v2364
    %2400 = vmatprep.subr.bf16.mxu0 0
    %2401 = vmatpush1.bf16.msra.mxu0 %v2363
    %2402 = vmatprep.subr.bf16.mxu0 0
    %2403 = vmatpush1.bf16.msra.mxu0 %v2362
    %2404 = vmatprep.subr.bf16.mxu0 0
    %2405 = vmatpush1.bf16.msra.mxu0 %v2361
    %2406 = vmatprep.subr.bf16.mxu0 0
    %2407 = vmatpush1.bf16.msra.mxu0 %v2360
    %2408 = vmatprep.subr.bf16.mxu0 0
    %2409 = vmatpush1.bf16.msra.mxu0 %v2359
    %2410 = vmatprep.subr.bf16.mxu0 0
    %2411 = vmatpush2.bf16.msra.mxu0 %v2374
    %2412 = vmatprep.subr.bf16.mxu0 0
    %2413 = vmatpush2.bf16.msra.mxu0 %v2373
    %2414 = vmatprep.subr.bf16.mxu0 0
    %2415 = vmatpush2.bf16.msra.mxu0 %v2372
    %2416 = vmatprep.subr.bf16.mxu0 0
    %2417 = vmatpush2.bf16.msra.mxu0 %v2371
    %2418 = vmatprep.subr.bf16.mxu0 0
    %2419 = vmatpush2.bf16.msra.mxu0 %v2370
    %2420 = vmatprep.subr.bf16.mxu0 0
    %2421 = vmatpush2.bf16.msra.mxu0 %v2369
    %2422 = vmatprep.subr.bf16.mxu0 0
    %2423 = vmatpush2.bf16.msra.mxu0 %v2368
    %2424 = vmatprep.subr.bf16.mxu0 0
    %2425 = vmatpush2.bf16.msra.mxu0 %v2367
    %2426 = vmatprep.mubr.bf16.mxu0 %v2292
    %2427 = vmatmul.mubr.bf16.gmra.mxu0 %v2291
    %v2428 = vpop.f32.mrf.mxu0
    %v2429 = vadd.f32 %v2392, %v2428
    %v2430 = vpop.f32.mrf.mxu0
    %v2431 = vpop.f32.mrf.mxu0
    %v2432 = vpop.f32.mrf.mxu0
    %2433 = vdwg.mxu0
    %vm2434 = vcmp.gt.f32.partialorder %v2429, 0.0
    %v2435 = vmul.f32 %v2429, 1.442695
    %v2436 = vpow.pop %v2435
    %v2437 = vsub.f32 %v2436, 1.0
    %v2438 = vsel %vm2434, %v2429, %v2437
    %v2439 = vld [vmem:[%s2 + $0xa0] sm:$0xf]
    %v2440 = vld [vmem:[%s2 + $0xa4] sm:$0xf]
    %v2441 = vld [vmem:[%s2 + $0xa8] sm:$0xf]
    %v2442 = vld [vmem:[%s2 + $0xac] sm:$0xf]
    %v2443 = vld [vmem:[%s2 + $0xb0] sm:$0xf]
    %v2444 = vld [vmem:[%s2 + $0xb4] sm:$0xf]
    %v2445 = vld [vmem:[%s2 + $0xb8] sm:$0xf]
    %v2446 = vld [vmem:[%s2 + $0xbc] sm:$0xf]
    %v2447 = vld [vmem:[%s2 + $0xc0] sm:$0xf]
    %v2448 = vld [vmem:[%s2 + $0xc4] sm:$0xf]
    %v2449 = vld [vmem:[%s2 + $0xc8] sm:$0xf]
    %v2450 = vld [vmem:[%s2 + $0xcc] sm:$0xf]
    %v2451 = vld [vmem:[%s2 + $0xd0] sm:$0xf]
    %v2452 = vld [vmem:[%s2 + $0xd4] sm:$0xf]
    %v2453 = vld [vmem:[%s2 + $0xd8] sm:$0xf]
    %v2454 = vld [vmem:[%s2 + $0xdc] sm:$0xf]
    %v2455 = vpack.c.bf16 %v2438, %v2438
    %v2456 = vld [vmem:[%s2 + $0xe0] sm:$0x1]
    %v2457 = vunpack.c.l.bf16 %v2456
    %v2474 = vunpack.c.l.b16 %v2439
    %v2475 = vunpack.c.l.b16 %v2440
    %v2476 = vunpack.c.l.b16 %v2441
    %v2477 = vunpack.c.l.b16 %v2442
    %v2478 = vunpack.c.l.b16 %v2443
    %v2479 = vunpack.c.l.b16 %v2444
    %v2480 = vunpack.c.l.b16 %v2445
    %v2481 = vunpack.c.l.b16 %v2446
    %v2482 = vunpack.c.l.b16 %v2447
    %v2483 = vunpack.c.l.b16 %v2448
    %v2484 = vunpack.c.l.b16 %v2449
    %v2485 = vunpack.c.l.b16 %v2450
    %v2486 = vunpack.c.l.b16 %v2451
    %v2487 = vunpack.c.l.b16 %v2452
    %v2488 = vunpack.c.l.b16 %v2453
    %v2489 = vunpack.c.l.b16 %v2454
    %v2490 = vpack.c.b16 %v2475, %v2474
    %v2491 = vpack.c.b16 %v2477, %v2476
    %v2492 = vpack.c.b16 %v2479, %v2478
    %v2493 = vpack.c.b16 %v2481, %v2480
    %v2494 = vpack.c.b16 %v2483, %v2482
    %v2495 = vpack.c.b16 %v2485, %v2484
    %v2496 = vpack.c.b16 %v2487, %v2486
    %v2497 = vpack.c.b16 %v2489, %v2488
    %2506 = vmatprep.subr.bf16.mxu0 0
    %2507 = vmatpush1.bf16.msra.mxu0 %v2497
    %2508 = vmatprep.subr.bf16.mxu0 0
    %2509 = vmatpush1.bf16.msra.mxu0 %v2496
    %2510 = vmatprep.subr.bf16.mxu0 0
    %2511 = vmatpush1.bf16.msra.mxu0 %v2495
    %2512 = vmatprep.subr.bf16.mxu0 0
    %2513 = vmatpush1.bf16.msra.mxu0 %v2494
    %2514 = vmatprep.subr.bf16.mxu0 0
    %2515 = vmatpush1.bf16.msra.mxu0 %v2493
    %2516 = vmatprep.subr.bf16.mxu0 0
    %2517 = vmatpush1.bf16.msra.mxu0 %v2492
    %2518 = vmatprep.subr.bf16.mxu0 0
    %2519 = vmatpush1.bf16.msra.mxu0 %v2491
    %2520 = vmatprep.subr.bf16.mxu0 0
    %2521 = vmatpush1.bf16.msra.mxu0 %v2490
    %2522 = vmatprep.subr.bf16.mxu0 0
    %2523 = vmatpush2.bf16.msra.mxu0 0
    %2524 = vmatprep.subr.bf16.mxu0 0
    %2525 = vmatpush2.bf16.msra.mxu0 0
    %2526 = vmatprep.subr.bf16.mxu0 0
    %2527 = vmatpush2.bf16.msra.mxu0 0
    %2528 = vmatprep.subr.bf16.mxu0 0
    %2529 = vmatpush2.bf16.msra.mxu0 0
    %2530 = vmatprep.subr.bf16.mxu0 0
    %2531 = vmatpush2.bf16.msra.mxu0 0
    %2532 = vmatprep.subr.bf16.mxu0 0
    %2533 = vmatpush2.bf16.msra.mxu0 0
    %2534 = vmatprep.subr.bf16.mxu0 0
    %2535 = vmatpush2.bf16.msra.mxu0 0
    %2536 = vmatprep.subr.bf16.mxu0 0
    %2537 = vmatpush2.bf16.msra.mxu0 0
    %2538 = vmatprep.mubr.bf16.mxu0 0
    %2539 = vmatmul.mubr.bf16.gmra.mxu0 %v2455
    %v2540 = vpop.f32.mrf.mxu0
    %v2541 = vadd.f32 %v2457, %v2540
    %v2542 = vpop.f32.mrf.mxu0
    %v2543 = vpop.f32.mrf.mxu0
    %v2544 = vpop.f32.mrf.mxu0
    %2545 = vdwg.mxu0
    %v2546 = vtanh.pop %v2541
    %vm2547 = vcmask 90112
    %2548 = vst.msk [vmem:[#allocation5] sm:$0x1] %vm2547, %v2546
    // Predicated region
    $region34: #{_lambda_.1} parent=1 // pred_check
      _
    $region35: #{_lambda_.1} parent=1 // pred_check_branch
      %2550 = sbr.rel (0) target = $region37
    $region36: #{_lambda_.1} parent=1 // pred_region
      %s2552 = ssub.s32 16, 16
      %2553 = vsyncadd [#allocation4], %s2552
      %s2555 = sshll.u32 [#allocation5], 4
      %s2556 = int_to_ptr.vmem [resolvable:$true] %s2555
      %2558 = dma.vmem_to_hbm [thread:$0]  %s2556, 16, %s7, [#allocation4]
    $region37: #{_lambda_.1} parent=1 // pred_fallthru
      _
    // Predicated region
    $region38: #{_lambda_.1} parent=1 // pred_check
      _
    $region39: #{_lambda_.1} parent=1 // pred_check_branch
      %2560 = sbr.rel (0) target = $region41
    $region40: #{_lambda_.1} parent=1 // pred_region
      %2561 = dma.done [#allocation4], 16
    $region41: #{_lambda_.1} parent=1 // pred_fallthru
      _
    %2562 = vsyncpa [#allocation3], 1
    %2563 = vsyncpa [#allocation4], 1

</llo_original>
